<compile_context>
chip_gen: v6e
topology: v6e:2x2x1
jax: 0.10.0
libtpu: 0.0.40
codegen_flags: <defaults>
</compile_context>

<pallas_src>
import functools

import jax
import jax.numpy as jnp
import numpy as np
from jax.experimental import pallas as pl
from jax.experimental.pallas import tpu as pltpu

NEG_INF = -1e30
BN_EPS = 1e-5
LEAKY_SLOPE = 0.2
VMEM_LIMIT = 32 * 1024 * 1024  # safe scoped-VMEM budget on v5e / v6e / v7x


def _round_up(x, m):
    return ((x + m - 1) // m) * m


# --------------------------------------------------------------------------- #
# Kernel 1: linear projection + per-node attention terms (row tiled).
# --------------------------------------------------------------------------- #
def prep_kernel(x_ref, w_ref, emb_ref, att_i_ref, att_em_i_ref, att_j_ref, att_em_j_ref,
                xl_ref, a_dst_ref, a_src_ref):
    xl = jnp.dot(x_ref[...], w_ref[...], preferred_element_type=jnp.float32)    # [rt, C]
    xl_ref[...] = xl.astype(jnp.bfloat16)
    emb = emb_ref[...]

    # target-node (dst) term as a column vector: <xl, att_i> + <emb, att_em_i>
    a_dst_ref[...] = (jnp.dot(xl, att_i_ref[...], preferred_element_type=jnp.float32)
                      + jnp.dot(emb, att_em_i_ref[...], preferred_element_type=jnp.float32))
    # source-node (src) term laid out along lanes (dot_general avoids transposes / concat)
    dn = (((1,), (1,)), ((), ()))
    a_src_ref[...] = (jax.lax.dot_general(att_j_ref[...], xl, dn,
                                          preferred_element_type=jnp.float32)
                      + jax.lax.dot_general(att_em_j_ref[...], emb, dn,
                                            preferred_element_type=jnp.float32))


# --------------------------------------------------------------------------- #
# Kernel 2: block-sparse masked scatter-softmax + aggregation
#   grid = (row_tiles, max_blocks_per_row); the k axis walks only the non-empty
#   src-tile blocks of each row tile (indices come from scalar prefetch).
#   Flash-style online softmax carried in VMEM scratch (m / l / acc).
#   Finalize also emits per-row-tile BatchNorm partial statistics.
# --------------------------------------------------------------------------- #
def attn_agg_kernel(n_real, row_tile,
                    blk_idx_ref, blk_cnt_ref,           # scalar-prefetch (SMEM)
                    a_dst_ref, a_src_ref, adj_ref, xl_ref,
                    o_ref, stats_ref,
                    m_ref, l_ref, acc_ref):
    del blk_idx_ref  # only used by the index_maps
    i = pl.program_id(0)
    k = pl.program_id(1)

    @pl.when(k == 0)
    def _():
        m_ref[...] = jnp.full_like(m_ref, NEG_INF)
        l_ref[...] = jnp.zeros_like(l_ref)
        acc_ref[...] = jnp.zeros_like(acc_ref)

    # Only the first blk_cnt[i] schedule entries are real blocks; padded entries repeat the
    # previous block index (no new DMA) and are skipped here.
    @pl.when(k < blk_cnt_ref[i])
    def _():
        # scores[r, s] = leaky_relu(a_dst[r] + a_src[s]) + additive mask (0 / -1e30)
        s = a_dst_ref[...] + a_src_ref[...]                     # [rt, st]
        s = jnp.where(s >= 0, s, LEAKY_SLOPE * s)               # leaky_relu(0.2)
        s = s + adj_ref[...].astype(jnp.float32)                # bf16 additive mask

        m_prev = m_ref[...]
        m_new = jnp.maximum(m_prev, jnp.max(s, axis=-1, keepdims=True))
        corr = jnp.exp(m_prev - m_new)
        p = jnp.exp(s - m_new)                                  # masked entries underflow to 0
        l_ref[...] = corr * l_ref[...] + jnp.sum(p, axis=-1, keepdims=True)
        acc_ref[...] = corr * acc_ref[...] + jnp.dot(
            p.astype(jnp.bfloat16), xl_ref[...], preferred_element_type=jnp.float32)
        m_ref[...] = m_new

    @pl.when(k == pl.num_programs(1) - 1)
    def _():
        inv_l = pl.reciprocal(l_ref[...], approx=True)          # EUP, not an N^2 divide
        out = acc_ref[...] * inv_l
        o_ref[...] = out

        # BatchNorm partial statistics for this row tile, excluding padded rows.
        c = acc_ref.shape[-1]
        row = i * row_tile + jax.lax.broadcasted_iota(jnp.int32, (row_tile, 1), 0)
        valid = (row < n_real).astype(jnp.float32)
        vout = out * valid
        psum = jnp.sum(vout, axis=0, keepdims=True)             # (1, C)
        psq = jnp.sum(vout * out, axis=0, keepdims=True)        # (1, C)  == sum(valid * out^2)
        stats_ref[0] = jnp.concatenate(
            [psum, psq, jnp.zeros((6, c), jnp.float32)], axis=0)  # (8, C) aligned block


# --------------------------------------------------------------------------- #
# Kernel 3: row-tiled BatchNorm apply (stats were reduced from pass-2 partials).
# --------------------------------------------------------------------------- #
def bn_apply_kernel(x_ref, mean_ref, inv_std_ref, gamma_ref, beta_ref, o_ref):
    o_ref[...] = ((x_ref[...] - mean_ref[...]) * (gamma_ref[...] * inv_std_ref[...])
                  + beta_ref[...])


# --------------------------------------------------------------------------- #
# Wrapper
# --------------------------------------------------------------------------- #
def gnn_layer_forward(x, edge_index, embedding, params, *, row_tile=512, src_tile=512):
    # Tile notes: pass-2 footprint ~2.5 MiB -> safe everywhere; on v5e/v6e with dense-ish
    # graphs src_tile can be raised to 1024-2048 (cap lower on v7x: 64 MiB VMEM / TC).
    N, in_c = x.shape
    C = params["w"].shape[1]
    assert src_tile % row_tile == 0

    Np = _round_up(max(N, 1), src_tile)
    n_rt = Np // row_tile
    n_st = Np // src_tile

    x_p = jnp.pad(x, ((0, Np - N), (0, 0)))
    emb_p = jnp.pad(embedding, ((0, Np - N), (0, 0)))

    # ---- additive attention mask, built directly in bf16 (no f32 N^2 intermediate) --------
    # remove_self_loops followed by add_self_loops == "all given edges plus every self loop"
    # for a presence mask; padded rows get a self loop too so their softmax stays finite.
    # TODO(synk): generate the mask per block inside the kernel from a scalar-prefetched
    #             edge list to eliminate the O(N^2) mask array in HBM entirely.
    src, dst = edge_index[0], edge_index[1]
    diag = jnp.arange(Np, dtype=jnp.int32)
    adj_bias = jnp.full((Np, Np), NEG_INF, dtype=jnp.bfloat16)
    adj_bias = adj_bias.at[dst, src].set(0.0)
    adj_bias = adj_bias.at[diag, diag].set(0.0)

    # ---- block-sparse schedule (host-side graph preprocessing, needs concrete edges) ------
    src_np = np.asarray(jax.device_get(edge_index[0]))
    dst_np = np.asarray(jax.device_get(edge_index[1]))
    occ = np.zeros((n_rt, n_st), dtype=bool)
    occ[dst_np // row_tile, src_np // src_tile] = True
    nodes = np.arange(Np)
    occ[nodes // row_tile, nodes // src_tile] = True                 # self loops (all rows)
    cnt_np = occ.sum(axis=1).astype(np.int32)                        # >= 1 for every row tile
    max_blks = int(cnt_np.max())
    blk_idx_np = np.zeros((n_rt, max_blks), dtype=np.int32)
    for r in range(n_rt):
        idxs = np.nonzero(occ[r])[0]
        blk_idx_np[r, :idxs.size] = idxs
        blk_idx_np[r, idxs.size:] = idxs[-1]      # repeat last -> unchanged block, DMA skipped
    blk_idx = jnp.asarray(blk_idx_np.reshape(-1))                    # 1-D (avoids SMEM 2-D pad)
    blk_cnt = jnp.asarray(cnt_np)

    # ---- pass 1: x@W (bf16 for the aggregation MXU matmul) + per-node attention terms -----
    att_i_col = params["att_i"][:, None]
    att_em_i_col = params["att_em_i"][:, None]
    att_j_row = params["att_j"][None, :]
    att_em_j_row = params["att_em_j"][None, :]

    xl_bf16, a_dst, a_src = pl.pallas_call(
        prep_kernel,
        out_shape=(jax.ShapeDtypeStruct((Np, C), jnp.bfloat16),
                   jax.ShapeDtypeStruct((Np, 1), jnp.float32),
                   jax.ShapeDtypeStruct((1, Np), jnp.float32)),
        grid_spec=pltpu.PrefetchScalarGridSpec(
            num_scalar_prefetch=0,
            grid=(n_rt,),
            in_specs=[pl.BlockSpec((row_tile, in_c), lambda i: (i, 0)),
                      pl.BlockSpec((in_c, C), lambda i: (0, 0)),
                      pl.BlockSpec((row_tile, C), lambda i: (i, 0)),
                      pl.BlockSpec((C, 1), lambda i: (0, 0)),
                      pl.BlockSpec((C, 1), lambda i: (0, 0)),
                      pl.BlockSpec((1, C), lambda i: (0, 0)),
                      pl.BlockSpec((1, C), lambda i: (0, 0))],
            out_specs=[pl.BlockSpec((row_tile, C), lambda i: (i, 0)),
                       pl.BlockSpec((row_tile, 1), lambda i: (i, 0)),
                       pl.BlockSpec((1, row_tile), lambda i: (0, i))]),
        compiler_params=pltpu.CompilerParams(
            dimension_semantics=("parallel",),
            vmem_limit_bytes=VMEM_LIMIT),
    )(x_p, params["w"], emb_p, att_i_col, att_em_i_col, att_j_row, att_em_j_row)

    # ---- pass 2: block-sparse masked softmax + aggregation + BN partial stats -------------
    kernel2 = functools.partial(attn_agg_kernel, N, row_tile)

    def blk(i, k, idx_ref, cnt_ref):
        del cnt_ref
        return idx_ref[i * max_blks + k]

    out_pad, stats = pl.pallas_call(
        kernel2,
        out_shape=(jax.ShapeDtypeStruct((Np, C), jnp.float32),
                   jax.ShapeDtypeStruct((n_rt, 8, C), jnp.float32)),
        grid_spec=pltpu.PrefetchScalarGridSpec(
            num_scalar_prefetch=2,
            grid=(n_rt, max_blks),
            in_specs=[pl.BlockSpec((row_tile, 1), lambda i, k, idx, cnt: (i, 0)),
                      pl.BlockSpec((1, src_tile), lambda i, k, idx, cnt: (0, blk(i, k, idx, cnt))),
                      pl.BlockSpec((row_tile, src_tile),
                                   lambda i, k, idx, cnt: (i, blk(i, k, idx, cnt))),
                      pl.BlockSpec((src_tile, C), lambda i, k, idx, cnt: (blk(i, k, idx, cnt), 0))],
            out_specs=[pl.BlockSpec((row_tile, C), lambda i, k, idx, cnt: (i, 0)),
                       pl.BlockSpec((1, 8, C), lambda i, k, idx, cnt: (i, 0, 0))],
            scratch_shapes=[pltpu.VMEM((row_tile, 1), jnp.float32),   # running max m
                            pltpu.VMEM((row_tile, 1), jnp.float32),   # running denom l
                            pltpu.VMEM((row_tile, C), jnp.float32)]), # running numerator
        compiler_params=pltpu.CompilerParams(
            dimension_semantics=("parallel", "arbitrary"),
            vmem_limit_bytes=VMEM_LIMIT),
    )(blk_idx, blk_cnt, a_dst, a_src, adj_bias, xl_bf16)

    # ---- tiny (n_rt, C) reduction of the partial statistics, then tiled BN apply ----------
    total = jnp.sum(stats[:, 0, :], axis=0, keepdims=True)           # (1, C)
    totsq = jnp.sum(stats[:, 1, :], axis=0, keepdims=True)           # (1, C)
    mean = total / N
    var = totsq / N - mean * mean                                    # biased var (BN training)
    inv_std = jax.lax.rsqrt(var + BN_EPS)

    n_bt = pl.cdiv(N, row_tile)
    out = pl.pallas_call(
        bn_apply_kernel,
        out_shape=jax.ShapeDtypeStruct((N, C), jnp.float32),
        grid=(n_bt,),
        in_specs=[pl.BlockSpec((row_tile, C), lambda i: (i, 0)),
                  pl.BlockSpec((1, C), lambda i: (0, 0)),
                  pl.BlockSpec((1, C), lambda i: (0, 0)),
                  pl.BlockSpec((1, C), lambda i: (0, 0)),
                  pl.BlockSpec((1, C), lambda i: (0, 0))],
        out_specs=pl.BlockSpec((row_tile, C), lambda i: (i, 0)),
        compiler_params=pltpu.CompilerParams(
            dimension_semantics=("parallel",),
            vmem_limit_bytes=VMEM_LIMIT),
    )(out_pad, mean, inv_std, params["gamma"][None, :], params["beta"][None, :])
    return out


# --------------------------------------------------------------------------- #
# Edge-based pure-JAX reference (PyG GraphLayer semantics), f32 throughout.
# --------------------------------------------------------------------------- #
def reference_forward(x, edge_index, embedding, params):
    N = x.shape[0]
    src, dst = edge_index[0], edge_index[1]
    loop = jnp.arange(N, dtype=src.dtype)
    src = jnp.concatenate([src, loop])          # add_self_loops (inputs have none)
    dst = jnp.concatenate([dst, loop])

    xl = x @ params["w"]
    a = ((xl[dst] * params["att_i"]).sum(-1)
         + (embedding[dst] * params["att_em_i"]).sum(-1)
         + (xl[src] * params["att_j"]).sum(-1)
         + (embedding[src] * params["att_em_j"]).sum(-1))
    a = jnp.where(a >= 0, a, LEAKY_SLOPE * a)
    amax = jax.ops.segment_max(a, dst, num_segments=N)
    e = jnp.exp(a - amax[dst])
    den = jax.ops.segment_sum(e, dst, num_segments=N)
    alpha = e / den[dst]
    out = jax.ops.segment_sum(xl[src] * alpha[:, None], dst, num_segments=N)
    out = out + params["bias"]                  # kernel drops this; BN mean subtraction cancels it
    mean = out.mean(0)
    var = ((out - mean) ** 2).mean(0)
    return params["gamma"] * (out - mean) / jnp.sqrt(var + BN_EPS) + params["beta"]


if __name__ == "__main__":
    N = 1000          # node_num (padded to 1024 inside the wrapper)
    IN_C = 64         # in_channel
    OUT_C = 128       # out_channel (== embedding dim); 128 keeps the output lane-dense
    K = 5             # in-neighbors per node

    key = jax.random.PRNGKey(0)
    kx, ke, kw, ka1, ka2, ka3, ka4, kb, kg, kbe = jax.random.split(key, 10)

    x = jax.random.normal(kx, (N, IN_C), dtype=jnp.float32)
    embedding = jax.random.normal(ke, (N, OUT_C), dtype=jnp.float32)

    params = {
        "w": jax.random.normal(kw, (IN_C, OUT_C), jnp.float32) / np.sqrt(IN_C),  # lin.weight.T
        "att_i": jax.random.normal(ka1, (OUT_C,), jnp.float32) * 0.2,
        "att_j": jax.random.normal(ka2, (OUT_C,), jnp.float32) * 0.2,
        "att_em_i": jax.random.normal(ka3, (OUT_C,), jnp.float32) * 0.2,
        "att_em_j": jax.random.normal(ka4, (OUT_C,), jnp.float32) * 0.2,
        "bias": jax.random.normal(kb, (OUT_C,), jnp.float32) * 0.1,
        "gamma": 1.0 + 0.1 * jax.random.normal(kg, (OUT_C,), jnp.float32),  # BN weight
        "beta": 0.1 * jax.random.normal(kbe, (OUT_C,), jnp.float32),        # BN bias
    }

    # Deterministic directed edge set (no self loops, no duplicates):
    # node i receives from i+1 .. i+K (mod N).
    dst = np.repeat(np.arange(N), K)
    src = (dst + np.tile(np.arange(1, K + 1), N)) % N
    edge_index = jnp.asarray(np.stack([src, dst], axis=0), dtype=jnp.int32)   # [2, K*N]

    out = jax.block_until_ready(gnn_layer_forward(x, edge_index, embedding, params))

    ref = reference_forward(x, edge_index, embedding, params)
    # Tolerance reflects the bf16 probabilities / bf16 x_lin in the aggregation matmul.
    np.testing.assert_allclose(np.asarray(out), np.asarray(ref), rtol=5e-2, atol=5e-2)

    print("KERNEL_OK")
</pallas_src>

<mosaic_0001>
module attributes {stable_mosaic.version = 11 : i64} {
  func.func @prep_kernel(%arg0: i32, %arg1: memref<512x64xf32, #tpu.memory_space<vmem>>, %arg2: memref<64x128xf32, #tpu.memory_space<vmem>>, %arg3: memref<512x128xf32, #tpu.memory_space<vmem>>, %arg4: memref<128x1xf32, #tpu.memory_space<vmem>>, %arg5: memref<128x1xf32, #tpu.memory_space<vmem>>, %arg6: memref<1x128xf32, #tpu.memory_space<vmem>>, %arg7: memref<1x128xf32, #tpu.memory_space<vmem>>, %arg8: memref<512x128xbf16, #tpu.memory_space<vmem>>, %arg9: memref<512x1xf32, #tpu.memory_space<vmem>>, %arg10: memref<1x512xf32, #tpu.memory_space<vmem>>) attributes {dimension_semantics = [#tpu.dimension_semantics<parallel>], iteration_bounds = array<i64: 2>, scalar_prefetch = 0 : i64, scratch_operands = 0 : i64, tpu.core_type = #tpu.core_type<tc>, window_params = [{transform_indices = @transform_0, window_bounds = array<i64: 512, 64>}, {pipeline_mode = #tpu.pipeline_mode<synchronous>, transform_indices = @transform_1, window_bounds = array<i64: 64, 128>}, {transform_indices = @transform_2, window_bounds = array<i64: 512, 128>}, {pipeline_mode = #tpu.pipeline_mode<synchronous>, transform_indices = @transform_3, window_bounds = array<i64: 128, 1>}, {pipeline_mode = #tpu.pipeline_mode<synchronous>, transform_indices = @transform_4, window_bounds = array<i64: 128, 1>}, {pipeline_mode = #tpu.pipeline_mode<synchronous>, transform_indices = @transform_5, window_bounds = array<i64: 1, 128>}, {pipeline_mode = #tpu.pipeline_mode<synchronous>, transform_indices = @transform_6, window_bounds = array<i64: 1, 128>}, {transform_indices = @transform_7, window_bounds = array<i64: 512, 128>}, {transform_indices = @transform_8, window_bounds = array<i64: 512, 1>}, {transform_indices = @transform_9, window_bounds = array<i64: 1, 512>}]} {
    %c0 = arith.constant 0 : index
    %c0_0 = arith.constant 0 : index
    %0 = vector.load %arg1[%c0, %c0_0] : memref<512x64xf32, #tpu.memory_space<vmem>>, vector<512x64xf32>
    %c0_1 = arith.constant 0 : index
    %c0_2 = arith.constant 0 : index
    %1 = vector.load %arg2[%c0_1, %c0_2] : memref<64x128xf32, #tpu.memory_space<vmem>>, vector<64x128xf32>
    %cst = arith.constant dense<0.000000e+00> : vector<512x128xf32>
    %2 = tpu.matmul %0, %1, %cst {dimension_numbers = #tpu.dot_dimension_numbers<[1], [0], [0], [1], [0, 0, 1, 1], [], []>} : vector<512x64xf32>, vector<64x128xf32>, vector<512x128xf32> -> vector<512x128xf32>
    %3 = arith.truncf %2 : vector<512x128xf32> to vector<512x128xbf16>
    %c0_3 = arith.constant 0 : index
    %c0_4 = arith.constant 0 : index
    %4 = vector.load %arg8[%c0_3, %c0_4] : memref<512x128xbf16, #tpu.memory_space<vmem>>, vector<512x128xbf16>
    tpu.vector_store %arg8[%c0_3, %c0_4], %3 {strides = array<i32>} : memref<512x128xbf16, #tpu.memory_space<vmem>>, vector<512x128xbf16>,
    %c0_5 = arith.constant 0 : index
    %c0_6 = arith.constant 0 : index
    %5 = vector.load %arg3[%c0_5, %c0_6] : memref<512x128xf32, #tpu.memory_space<vmem>>, vector<512x128xf32>
    %c0_7 = arith.constant 0 : index
    %c0_8 = arith.constant 0 : index
    %6 = vector.load %arg4[%c0_7, %c0_8] : memref<128x1xf32, #tpu.memory_space<vmem>>, vector<128x1xf32>
    %cst_9 = arith.constant dense<0.000000e+00> : vector<512x1xf32>
    %7 = tpu.matmul %2, %6, %cst_9 {dimension_numbers = #tpu.dot_dimension_numbers<[1], [0], [0], [1], [0, 0, 1, 1], [], []>} : vector<512x128xf32>, vector<128x1xf32>, vector<512x1xf32> -> vector<512x1xf32>
    %c0_10 = arith.constant 0 : index
    %c0_11 = arith.constant 0 : index
    %8 = vector.load %arg5[%c0_10, %c0_11] : memref<128x1xf32, #tpu.memory_space<vmem>>, vector<128x1xf32>
    %cst_12 = arith.constant dense<0.000000e+00> : vector<512x1xf32>
    %9 = tpu.matmul %5, %8, %cst_12 {dimension_numbers = #tpu.dot_dimension_numbers<[1], [0], [0], [1], [0, 0, 1, 1], [], []>} : vector<512x128xf32>, vector<128x1xf32>, vector<512x1xf32> -> vector<512x1xf32>
    %10 = arith.addf %7, %9 : vector<512x1xf32>
    %c0_13 = arith.constant 0 : index
    %c0_14 = arith.constant 0 : index
    %11 = vector.load %arg9[%c0_13, %c0_14] : memref<512x1xf32, #tpu.memory_space<vmem>>, vector<512x1xf32>
    tpu.vector_store %arg9[%c0_13, %c0_14], %10 {strides = array<i32>} : memref<512x1xf32, #tpu.memory_space<vmem>>, vector<512x1xf32>,
    %c0_15 = arith.constant 0 : index
    %c0_16 = arith.constant 0 : index
    %12 = vector.load %arg6[%c0_15, %c0_16] : memref<1x128xf32, #tpu.memory_space<vmem>>, vector<1x128xf32>
    %cst_17 = arith.constant dense<0.000000e+00> : vector<1x512xf32>
    %13 = tpu.matmul %12, %2, %cst_17 {dimension_numbers = #tpu.dot_dimension_numbers<[1], [1], [0], [0], [0, 0, 1, 0], [], []>} : vector<1x128xf32>, vector<512x128xf32>, vector<1x512xf32> -> vector<1x512xf32>
    %c0_18 = arith.constant 0 : index
    %c0_19 = arith.constant 0 : index
    %14 = vector.load %arg7[%c0_18, %c0_19] : memref<1x128xf32, #tpu.memory_space<vmem>>, vector<1x128xf32>
    %cst_20 = arith.constant dense<0.000000e+00> : vector<1x512xf32>
    %15 = tpu.matmul %14, %5, %cst_20 {dimension_numbers = #tpu.dot_dimension_numbers<[1], [1], [0], [0], [0, 0, 1, 0], [], []>} : vector<1x128xf32>, vector<512x128xf32>, vector<1x512xf32> -> vector<1x512xf32>
    %16 = arith.addf %13, %15 : vector<1x512xf32>
    %c0_21 = arith.constant 0 : index
    %c0_22 = arith.constant 0 : index
    %17 = vector.load %arg10[%c0_21, %c0_22] : memref<1x512xf32, #tpu.memory_space<vmem>>, vector<1x512xf32>
    tpu.vector_store %arg10[%c0_21, %c0_22], %16 {strides = array<i32>} : memref<1x512xf32, #tpu.memory_space<vmem>>, vector<1x512xf32>,
    return
  }
  func.func @transform_0(%arg0: i32) -> (i32, i32) {
    %c0_i32 = arith.constant 0 : i32
    %c0_i32_0 = arith.constant 0 : i32
    return %arg0, %c0_i32 : i32, i32
  }
  func.func @transform_1(%arg0: i32) -> (i32, i32) {
    %c0_i32 = arith.constant 0 : i32
    %c0_i32_0 = arith.constant 0 : i32
    %c0_i32_1 = arith.constant 0 : i32
    return %c0_i32, %c0_i32_0 : i32, i32
  }
  func.func @transform_2(%arg0: i32) -> (i32, i32) {
    %c0_i32 = arith.constant 0 : i32
    %c0_i32_0 = arith.constant 0 : i32
    return %arg0, %c0_i32 : i32, i32
  }
  func.func @transform_3(%arg0: i32) -> (i32, i32) {
    %c0_i32 = arith.constant 0 : i32
    %c0_i32_0 = arith.constant 0 : i32
    %c0_i32_1 = arith.constant 0 : i32
    return %c0_i32, %c0_i32_0 : i32, i32
  }
  func.func @transform_4(%arg0: i32) -> (i32, i32) {
    %c0_i32 = arith.constant 0 : i32
    %c0_i32_0 = arith.constant 0 : i32
    %c0_i32_1 = arith.constant 0 : i32
    return %c0_i32, %c0_i32_0 : i32, i32
  }
  func.func @transform_5(%arg0: i32) -> (i32, i32) {
    %c0_i32 = arith.constant 0 : i32
    %c0_i32_0 = arith.constant 0 : i32
    %c0_i32_1 = arith.constant 0 : i32
    return %c0_i32, %c0_i32_0 : i32, i32
  }
  func.func @transform_6(%arg0: i32) -> (i32, i32) {
    %c0_i32 = arith.constant 0 : i32
    %c0_i32_0 = arith.constant 0 : i32
    %c0_i32_1 = arith.constant 0 : i32
    return %c0_i32, %c0_i32_0 : i32, i32
  }
  func.func @transform_7(%arg0: i32) -> (i32, i32) {
    %c0_i32 = arith.constant 0 : i32
    %c0_i32_0 = arith.constant 0 : i32
    return %arg0, %c0_i32 : i32, i32
  }
  func.func @transform_8(%arg0: i32) -> (i32, i32) {
    %c0_i32 = arith.constant 0 : i32
    %c0_i32_0 = arith.constant 0 : i32
    return %arg0, %c0_i32 : i32, i32
  }
  func.func @transform_9(%arg0: i32) -> (i32, i32) {
    %c0_i32 = arith.constant 0 : i32
    %c0_i32_0 = arith.constant 0 : i32
    return %c0_i32, %arg0 : i32, i32
  }
}

</mosaic_0001>

<llo_original>
// kernel: tpu_custom_call.1
$region0: #{tpu_custom_call.1}
  #allocation0 [shape = 'u32[]', space=smem, size = 0x4, offset = 0x4, fixed_abs, tag = 'smem constant byte address 0x4 - core index']
  #allocation1 [shape = 'u32[144,128]{1,0:T(1,128)}', space=vmem, size = 0x12000, scoped, tag = 'internal scratch']
  %s0 = inlined_call_operand.vmem [shape: f32[1024,64], index: 0, kind: input, shape index: {}]
  %s1 = inlined_call_operand.vmem [shape: f32[64,128], index: 1, kind: input, shape index: {}]
  %s2 = inlined_call_operand.vmem [shape: f32[1024,128], index: 2, kind: input, shape index: {}]
  %s3 = inlined_call_operand.vmem [shape: f32[128,1], index: 3, kind: input, shape index: {}]
  %s4 = inlined_call_operand.vmem [shape: f32[128,1], index: 4, kind: input, shape index: {}]
  %s5 = inlined_call_operand.vmem [shape: f32[1,128], index: 5, kind: input, shape index: {}]
  %s6 = inlined_call_operand.vmem [shape: f32[1,128], index: 6, kind: input, shape index: {}]
  %s7 = inlined_call_operand.hbm [shape: bf16[1024,128], index: 7, kind: output, shape index: {0}]
  %s8 = inlined_call_operand.vmem [shape: f32[1024,1], index: 8, kind: output, shape index: {1}]
  %s9 = inlined_call_operand.hbm [shape: f32[1,1024], index: 9, kind: output, shape index: {2}]
  %10 = xla_tuple %s7, %s8, %s9
  %s11 = sld [smem:[#allocation0]]
  $region77: #{tpu_custom_call.1} parent=0
    _
  %s13 = ssub.s32 1, %s11
  %s14 = scalar_select 0, %s13, %s11
  $region1: #{tpu_custom_call.1} parent=0
    #allocation2 [shape = 'u8[262144]{0}', space=vmem, size = 0x40000, scoped, tag = 'output window, operand 0']
    #allocation3 [shape = 's32[2]{0}', space=sflag, size = 0x8, scoped, tag = 'scoped memory for tpu_custom_call.1']
    #allocation4 [shape = 'u8[4096]{0}', space=vmem, size = 0x1000, scoped, tag = 'output window, operand 2']
    #allocation5 [shape = 's32[2]{0}', space=sflag, size = 0x8, scoped, tag = 'scoped memory for tpu_custom_call.1']
    %15 = vsyncpa [#allocation3], 0
    %s16 = scalar_lea.sflag [#allocation3], 1
    %17 = vsyncpa %s16, 0
    %18 = vsyncpa [#allocation5], 0
    %s19 = scalar_lea.sflag [#allocation5], 1
    %20 = vsyncpa %s19, 0
    loop: start=0, step=1, limit=4
    $region2: #{tpu_custom_call.1} parent=1 // loop_pre_header
      _
    $region3: #{tpu_custom_call.1} parent=1 // loop_header
      %s22 = sphi 0, %s26
      %p23 = scmp.ge.s32.totalorder %s22, 4
      %s32 = sphi 0, %s34
      %s35 = sphi 0, %s32
      %s36 = sphi 0, %s35
      %s52 = sphi 0, %s36
      %s56 = sphi 0, %s56
      %s58 = sphi 0, %s56
      %s59 = sphi 0, %s58
      %s73 = sphi 0, %s59
      %s79 = sphi 0, %s81
      %s82 = sphi 0, %s79
      %s83 = sphi 0, %s82
      %s99 = sphi 0, %s83
      %s103 = sphi 0, %s103
      %s105 = sphi 0, %s103
      %s106 = sphi 0, %s105
      %s120 = sphi 0, %s106
      %s124 = sphi 0, %s124
      %s126 = sphi 0, %s124
      %s127 = sphi 0, %s126
      %s141 = sphi 0, %s127
      %s145 = sphi 0, %s145
      %s147 = sphi 0, %s145
      %s148 = sphi 0, %s147
      %s162 = sphi 0, %s148
      %s166 = sphi 0, %s166
      %s168 = sphi 0, %s166
      %s169 = sphi 0, %s168
      %s183 = sphi 0, %s169
      %s189 = sphi 0, %s191
      %s192 = sphi 0, %s189
      %s193 = sphi 0, %s192
      %s209 = sphi 0, %s193
      %s215 = sphi 0, %s217
      %s218 = sphi 0, %s215
      %s219 = sphi 0, %s218
      %s235 = sphi 0, %s219
      %s241 = sphi 0, %s243
      %s244 = sphi 0, %s241
      %s245 = sphi 0, %s244
      %s261 = sphi 0, %s245
    $region4: #{tpu_custom_call.1} parent=1 // loop_header_branch
      %25 = sbr.rel (%p23) target = $region8
    $region5: #{tpu_custom_call.1} parent=1 // loop_body
      %s27 = ssub.s32 %s22, 1
      %s28 = ssub.s32 %s22, 2
      %s29 = sadd.s32 %s22, 1
      %s30 = ssub.s32 %s22, %s29
      %p31 = scmp.eq.s32.totalorder %s30, 0
      %s33 = sadd.s32 %s32, 1
      %s34 = scalar_select %p31, %s32, %s33
      %p37 = pneg %p31
      %p38 = scmp.eq.s32.totalorder %s22, 1
      %p39 = por %p37, %p38
      %p40 = scmp.ne.s32.totalorder %s32, %s35
      %p41 = scmp.eq.s32.totalorder %s22, 0
      %p42 = por %p40, %p41
      %p43 = scmp.ne.s32.totalorder %s32, %s35
      %p44 = scmp.eq.s32.totalorder %s27, 1
      %p45 = por %p43, %p44
      %p46 = scmp.ne.s32.totalorder %s35, %s36
      %p47 = scmp.eq.s32.totalorder %s27, 0
      %p48 = por %p46, %p47
      %p49 = scmp.ne.s32.totalorder %s35, %s36
      %p50 = scmp.eq.s32.totalorder %s28, 1
      %p51 = por %p49, %p50
      %p53 = scmp.ne.s32.totalorder %s36, %s52
      %p54 = scmp.eq.s32.totalorder %s28, 0
      %p55 = por %p53, %p54
      %s57 = sadd.s32 %s56, 1
      %p60 = scmp.eq.s32.totalorder %s22, 1
      %p61 = scmp.ne.s32.totalorder %s56, %s58
      %p62 = scmp.eq.s32.totalorder %s22, 0
      %p63 = por %p61, %p62
      %p64 = scmp.ne.s32.totalorder %s56, %s58
      %p65 = scmp.eq.s32.totalorder %s27, 1
      %p66 = por %p64, %p65
      %p67 = scmp.ne.s32.totalorder %s58, %s59
      %p68 = scmp.eq.s32.totalorder %s27, 0
      %p69 = por %p67, %p68
      %p70 = scmp.ne.s32.totalorder %s58, %s59
      %p71 = scmp.eq.s32.totalorder %s28, 1
      %p72 = por %p70, %p71
      %p74 = scmp.ne.s32.totalorder %s59, %s73
      %p75 = scmp.eq.s32.totalorder %s28, 0
      %p76 = por %p74, %p75
      %s77 = ssub.s32 %s22, %s29
      %p78 = scmp.eq.s32.totalorder %s77, 0
      %s80 = sadd.s32 %s79, 1
      %s81 = scalar_select %p78, %s79, %s80
      %p84 = pneg %p78
      %p85 = scmp.eq.s32.totalorder %s22, 1
      %p86 = por %p84, %p85
      %p87 = scmp.ne.s32.totalorder %s79, %s82
      %p88 = scmp.eq.s32.totalorder %s22, 0
      %p89 = por %p87, %p88
      %p90 = scmp.ne.s32.totalorder %s79, %s82
      %p91 = scmp.eq.s32.totalorder %s27, 1
      %p92 = por %p90, %p91
      %p93 = scmp.ne.s32.totalorder %s82, %s83
      %p94 = scmp.eq.s32.totalorder %s27, 0
      %p95 = por %p93, %p94
      %p96 = scmp.ne.s32.totalorder %s82, %s83
      %p97 = scmp.eq.s32.totalorder %s28, 1
      %p98 = por %p96, %p97
      %p100 = scmp.ne.s32.totalorder %s83, %s99
      %p101 = scmp.eq.s32.totalorder %s28, 0
      %p102 = por %p100, %p101
      %s104 = sadd.s32 %s103, 1
      %p107 = scmp.eq.s32.totalorder %s22, 1
      %p108 = scmp.ne.s32.totalorder %s103, %s105
      %p109 = scmp.eq.s32.totalorder %s22, 0
      %p110 = por %p108, %p109
      %p111 = scmp.ne.s32.totalorder %s103, %s105
      %p112 = scmp.eq.s32.totalorder %s27, 1
      %p113 = por %p111, %p112
      %p114 = scmp.ne.s32.totalorder %s105, %s106
      %p115 = scmp.eq.s32.totalorder %s27, 0
      %p116 = por %p114, %p115
      %p117 = scmp.ne.s32.totalorder %s105, %s106
      %p118 = scmp.eq.s32.totalorder %s28, 1
      %p119 = por %p117, %p118
      %p121 = scmp.ne.s32.totalorder %s106, %s120
      %p122 = scmp.eq.s32.totalorder %s28, 0
      %p123 = por %p121, %p122
      %s125 = sadd.s32 %s124, 1
      %p128 = scmp.eq.s32.totalorder %s22, 1
      %p129 = scmp.ne.s32.totalorder %s124, %s126
      %p130 = scmp.eq.s32.totalorder %s22, 0
      %p131 = por %p129, %p130
      %p132 = scmp.ne.s32.totalorder %s124, %s126
      %p133 = scmp.eq.s32.totalorder %s27, 1
      %p134 = por %p132, %p133
      %p135 = scmp.ne.s32.totalorder %s126, %s127
      %p136 = scmp.eq.s32.totalorder %s27, 0
      %p137 = por %p135, %p136
      %p138 = scmp.ne.s32.totalorder %s126, %s127
      %p139 = scmp.eq.s32.totalorder %s28, 1
      %p140 = por %p138, %p139
      %p142 = scmp.ne.s32.totalorder %s127, %s141
      %p143 = scmp.eq.s32.totalorder %s28, 0
      %p144 = por %p142, %p143
      %s146 = sadd.s32 %s145, 1
      %p149 = scmp.eq.s32.totalorder %s22, 1
      %p150 = scmp.ne.s32.totalorder %s145, %s147
      %p151 = scmp.eq.s32.totalorder %s22, 0
      %p152 = por %p150, %p151
      %p153 = scmp.ne.s32.totalorder %s145, %s147
      %p154 = scmp.eq.s32.totalorder %s27, 1
      %p155 = por %p153, %p154
      %p156 = scmp.ne.s32.totalorder %s147, %s148
      %p157 = scmp.eq.s32.totalorder %s27, 0
      %p158 = por %p156, %p157
      %p159 = scmp.ne.s32.totalorder %s147, %s148
      %p160 = scmp.eq.s32.totalorder %s28, 1
      %p161 = por %p159, %p160
      %p163 = scmp.ne.s32.totalorder %s148, %s162
      %p164 = scmp.eq.s32.totalorder %s28, 0
      %p165 = por %p163, %p164
      %s167 = sadd.s32 %s166, 1
      %p170 = scmp.eq.s32.totalorder %s22, 1
      %p171 = scmp.ne.s32.totalorder %s166, %s168
      %p172 = scmp.eq.s32.totalorder %s22, 0
      %p173 = por %p171, %p172
      %p174 = scmp.ne.s32.totalorder %s166, %s168
      %p175 = scmp.eq.s32.totalorder %s27, 1
      %p176 = por %p174, %p175
      %p177 = scmp.ne.s32.totalorder %s168, %s169
      %p178 = scmp.eq.s32.totalorder %s27, 0
      %p179 = por %p177, %p178
      %p180 = scmp.ne.s32.totalorder %s168, %s169
      %p181 = scmp.eq.s32.totalorder %s28, 1
      %p182 = por %p180, %p181
      %p184 = scmp.ne.s32.totalorder %s169, %s183
      %p185 = scmp.eq.s32.totalorder %s28, 0
      %p186 = por %p184, %p185
      %s187 = ssub.s32 %s22, %s29
      %p188 = scmp.eq.s32.totalorder %s187, 0
      %s190 = sadd.s32 %s189, 1
      %s191 = scalar_select %p188, %s189, %s190
      %p194 = pneg %p188
      %p195 = scmp.eq.s32.totalorder %s22, 1
      %p196 = por %p194, %p195
      %p197 = scmp.ne.s32.totalorder %s189, %s192
      %p198 = scmp.eq.s32.totalorder %s22, 0
      %p199 = por %p197, %p198
      %p200 = scmp.ne.s32.totalorder %s189, %s192
      %p201 = scmp.eq.s32.totalorder %s27, 1
      %p202 = por %p200, %p201
      %p203 = scmp.ne.s32.totalorder %s192, %s193
      %p204 = scmp.eq.s32.totalorder %s27, 0
      %p205 = por %p203, %p204
      %p206 = scmp.ne.s32.totalorder %s192, %s193
      %p207 = scmp.eq.s32.totalorder %s28, 1
      %p208 = por %p206, %p207
      %p210 = scmp.ne.s32.totalorder %s193, %s209
      %p211 = scmp.eq.s32.totalorder %s28, 0
      %p212 = por %p210, %p211
      %s213 = ssub.s32 %s22, %s29
      %p214 = scmp.eq.s32.totalorder %s213, 0
      %s216 = sadd.s32 %s215, 1
      %s217 = scalar_select %p214, %s215, %s216
      %p220 = pneg %p214
      %p221 = scmp.eq.s32.totalorder %s22, 1
      %p222 = por %p220, %p221
      %p223 = scmp.ne.s32.totalorder %s215, %s218
      %p224 = scmp.eq.s32.totalorder %s22, 0
      %p225 = por %p223, %p224
      %p226 = scmp.ne.s32.totalorder %s215, %s218
      %p227 = scmp.eq.s32.totalorder %s27, 1
      %p228 = por %p226, %p227
      %p229 = scmp.ne.s32.totalorder %s218, %s219
      %p230 = scmp.eq.s32.totalorder %s27, 0
      %p231 = por %p229, %p230
      %p232 = scmp.ne.s32.totalorder %s218, %s219
      %p233 = scmp.eq.s32.totalorder %s28, 1
      %p234 = por %p232, %p233
      %p236 = scmp.ne.s32.totalorder %s219, %s235
      %p237 = scmp.eq.s32.totalorder %s28, 0
      %p238 = por %p236, %p237
      %s239 = ssub.s32 %s22, %s29
      %p240 = scmp.eq.s32.totalorder %s239, 0
      %s242 = sadd.s32 %s241, 1
      %s243 = scalar_select %p240, %s241, %s242
      %p246 = pneg %p240
      %p247 = scmp.eq.s32.totalorder %s22, 1
      %p248 = por %p246, %p247
      %p249 = scmp.ne.s32.totalorder %s241, %s244
      %p250 = scmp.eq.s32.totalorder %s22, 0
      %p251 = por %p249, %p250
      %p252 = scmp.ne.s32.totalorder %s241, %s244
      %p253 = scmp.eq.s32.totalorder %s27, 1
      %p254 = por %p252, %p253
      %p255 = scmp.ne.s32.totalorder %s244, %s245
      %p256 = scmp.eq.s32.totalorder %s27, 0
      %p257 = por %p255, %p256
      %p258 = scmp.ne.s32.totalorder %s244, %s245
      %p259 = scmp.eq.s32.totalorder %s28, 1
      %p260 = por %p258, %p259
      %p262 = scmp.ne.s32.totalorder %s245, %s261
      %p263 = scmp.eq.s32.totalorder %s28, 0
      %p264 = por %p262, %p263
      %p265 = scmp.le.s32.totalorder 1, %s22
      %p266 = scmp.lt.s32.totalorder %s22, 3
      %p267 = pnand %p265, %p266
      %p268 = pneg %p267
      // Predicated region
      $region9: #{tpu_custom_call.1} parent=5 // pred_check
        _
      $region10: #{tpu_custom_call.1} parent=5 // pred_check_branch
        %270 = sbr.rel (%p267) target = $region12
      $region11: #{tpu_custom_call.1} parent=5 // pred_region
        %s271 = ssub.s32 %s22, 1
        // Predicated region
        $region13: #{tpu_custom_call.1} parent=11 // pred_check
          %p272 = pneg %p69
        $region14: #{tpu_custom_call.1} parent=11 // pred_check_branch
          %274 = sbr.rel (%p272) target = $region16
        $region15: #{tpu_custom_call.1} parent=11 // pred_region
          _
        $region16: #{tpu_custom_call.1} parent=11 // pred_fallthru
          _
        // Predicated region
        $region17: #{tpu_custom_call.1} parent=11 // pred_check
          %p275 = pneg %p116
        $region18: #{tpu_custom_call.1} parent=11 // pred_check_branch
          %277 = sbr.rel (%p275) target = $region20
        $region19: #{tpu_custom_call.1} parent=11 // pred_region
          _
        $region20: #{tpu_custom_call.1} parent=11 // pred_fallthru
          _
        // Predicated region
        $region21: #{tpu_custom_call.1} parent=11 // pred_check
          %p278 = pneg %p137
        $region22: #{tpu_custom_call.1} parent=11 // pred_check_branch
          %280 = sbr.rel (%p278) target = $region24
        $region23: #{tpu_custom_call.1} parent=11 // pred_region
          _
        $region24: #{tpu_custom_call.1} parent=11 // pred_fallthru
          _
        // Predicated region
        $region25: #{tpu_custom_call.1} parent=11 // pred_check
          %p281 = pneg %p158
        $region26: #{tpu_custom_call.1} parent=11 // pred_check_branch
          %283 = sbr.rel (%p281) target = $region28
        $region27: #{tpu_custom_call.1} parent=11 // pred_region
          _
        $region28: #{tpu_custom_call.1} parent=11 // pred_fallthru
          _
        // Predicated region
        $region29: #{tpu_custom_call.1} parent=11 // pred_check
          %p284 = pneg %p179
        $region30: #{tpu_custom_call.1} parent=11 // pred_check_branch
          %286 = sbr.rel (%p284) target = $region32
        $region31: #{tpu_custom_call.1} parent=11 // pred_region
          _
        $region32: #{tpu_custom_call.1} parent=11 // pred_fallthru
          _
      $region12: #{tpu_custom_call.1} parent=5 // pred_fallthru
        _
      %p287 = scmp.lt.s32.totalorder %s22, 2
      // Predicated region
      $region33: #{tpu_custom_call.1} parent=5 // pred_check
        %p288 = pneg %p287
      $region34: #{tpu_custom_call.1} parent=5 // pred_check_branch
        %290 = sbr.rel (%p288) target = $region36
      $region35: #{tpu_custom_call.1} parent=5 // pred_region
        // Predicated region
        $region37: #{tpu_custom_call.1} parent=35 // pred_check
          %p291 = pneg %p42
        $region38: #{tpu_custom_call.1} parent=35 // pred_check_branch
          %293 = sbr.rel (%p291) target = $region40
        $region39: #{tpu_custom_call.1} parent=35 // pred_region
          %s294 = smul.u32 64, %s22
          %p295 = scmp.lt.s32.totalorder %s294, 127
          %s296 = scalar_select %p295, %s294, 127
          %s297 = smul.addr %s296, 8
          %s298 = scalar_lea.vmem %s0, %s297
          %s299 = smul.u32 64, %s22
        $region40: #{tpu_custom_call.1} parent=35 // pred_fallthru
          _
        // Predicated region
        $region41: #{tpu_custom_call.1} parent=35 // pred_check
          %p300 = pneg %p89
        $region42: #{tpu_custom_call.1} parent=35 // pred_check_branch
          %302 = sbr.rel (%p300) target = $region44
        $region43: #{tpu_custom_call.1} parent=35 // pred_region
          %s303 = smul.u32 64, %s22
          %p304 = scmp.lt.s32.totalorder %s303, 127
          %s305 = scalar_select %p304, %s303, 127
          %s306 = smul.addr %s305, 8
          %s307 = scalar_lea.vmem %s2, %s306
          %s308 = smul.u32 64, %s22
        $region44: #{tpu_custom_call.1} parent=35 // pred_fallthru
          _
      $region36: #{tpu_custom_call.1} parent=5 // pred_fallthru
        _
      %p309 = scmp.le.s32.totalorder 1, %s22
      %p310 = scmp.lt.s32.totalorder %s22, 3
      %p311 = pnand %p309, %p310
      %p312 = pneg %p311
      // Predicated region
      $region45: #{tpu_custom_call.1} parent=5 // pred_check
        _
      $region46: #{tpu_custom_call.1} parent=5 // pred_check_branch
        %314 = sbr.rel (%p311) target = $region48
      $region47: #{tpu_custom_call.1} parent=5 // pred_region
        %s315 = ssub.s32 %s22, 1
        %s316 = smul.u32 64, %s27
        %p317 = scmp.lt.s32.totalorder %s316, 127
        %s318 = scalar_select %p317, %s316, 127
        %s319 = smul.addr %s318, 8
        %s320 = scalar_lea.vmem %s0, %s319
        %p321 = pneg %p48
        %p322 = pneg %p45
        %p323 = pneg %p69
        %p324 = pneg %p66
        %s325 = smul.u32 64, %s27
        %p326 = scmp.lt.s32.totalorder %s325, 127
        %s327 = scalar_select %p326, %s325, 127
        %s328 = smul.addr %s327, 8
        %s329 = scalar_lea.vmem %s2, %s328
        %p330 = pneg %p95
        %p331 = pneg %p92
        %p332 = pneg %p116
        %p333 = pneg %p113
        %p334 = pneg %p137
        %p335 = pneg %p134
        %p336 = pneg %p158
        %p337 = pneg %p155
        %p338 = pneg %p179
        %p339 = pneg %p176
        %p340 = pneg %p205
        %p341 = pneg %p202
        %s342 = sand.u32 %s192, 1
        %s343 = scalar_lea.sflag [#allocation3], %s342
        %s344 = sand.u32 %s192, 1
        %s345 = smul.addr %s344, 256
        %s346 = scalar_lea.vmem [#allocation2], %s345
        %p347 = pneg %p231
        %p348 = pneg %p228
        %s349 = smul.u32 64, %s27
        %p350 = scmp.lt.s32.totalorder %s349, 127
        %s351 = scalar_select %p350, %s349, 127
        %s352 = smul.addr %s351, 8
        %s353 = scalar_lea.vmem %s8, %s352
        %p354 = pneg %p257
        %p355 = pneg %p254
        %s356 = sand.u32 %s244, 1
        %s357 = scalar_lea.sflag [#allocation5], %s356
        %s358 = sand.u32 %s244, 1
        %s359 = smul.addr %s358, 4
        %s360 = scalar_lea.vmem [#allocation4], %s359
        %s361 = smul.u32 64, %s27
        %p362 = scmp.lt.s32.totalorder %s361, 127
        %s363 = scalar_select %p362, %s361, 127
        %s364 = smul.addr %s363, 8
        %s365 = scalar_lea.vmem %s0, %s364
        %s366 = smul.u32 64, %s27
        %s367 = smul.u32 64, %s27
        %p368 = scmp.lt.s32.totalorder %s367, 127
        %s369 = scalar_select %p368, %s367, 127
        %s370 = smul.addr %s369, 8
        %s371 = scalar_lea.vmem %s2, %s370
        %s372 = smul.u32 64, %s27
        %s373 = smul.u32 64, %s27
        %s374 = smul.u32 64, %s27
        %p375 = scmp.lt.s32.totalorder %s374, 127
        %s376 = scalar_select %p375, %s374, 127
        %s377 = smul.addr %s376, 8
        %s378 = scalar_lea.vmem %s8, %s377
        %s379 = smul.u32 64, %s27
        %s380 = smul.u32 4, %s27
        %v381 = vld [vmem:[%s365] sm:$0xff]
        %v382 = vld [vmem:[%s365 + $0x8] sm:$0xff]
        %v383 = vld [vmem:[%s365 + $0x10] sm:$0xff]
        %v384 = vld [vmem:[%s365 + $0x18] sm:$0xff]
        %v385 = vld [vmem:[%s365 + $0x20] sm:$0xff]
        %v386 = vld [vmem:[%s365 + $0x28] sm:$0xff]
        %v387 = vld [vmem:[%s365 + $0x30] sm:$0xff]
        %v388 = vld [vmem:[%s365 + $0x38] sm:$0xff]
        %v389 = vld [vmem:[%s365 + $0x40] sm:$0xff]
        %v390 = vld [vmem:[%s365 + $0x48] sm:$0xff]
        %v391 = vld [vmem:[%s365 + $0x50] sm:$0xff]
        %v392 = vld [vmem:[%s365 + $0x58] sm:$0xff]
        %v393 = vld [vmem:[%s365 + $0x60] sm:$0xff]
        %v394 = vld [vmem:[%s365 + $0x68] sm:$0xff]
        %v395 = vld [vmem:[%s365 + $0x70] sm:$0xff]
        %v396 = vld [vmem:[%s365 + $0x78] sm:$0xff]
        %v397 = vld [vmem:[%s365 + $0x80] sm:$0xff]
        %v398 = vld [vmem:[%s365 + $0x88] sm:$0xff]
        %v399 = vld [vmem:[%s365 + $0x90] sm:$0xff]
        %v400 = vld [vmem:[%s365 + $0x98] sm:$0xff]
        %v401 = vld [vmem:[%s365 + $0xa0] sm:$0xff]
        %v402 = vld [vmem:[%s365 + $0xa8] sm:$0xff]
        %v403 = vld [vmem:[%s365 + $0xb0] sm:$0xff]
        %v404 = vld [vmem:[%s365 + $0xb8] sm:$0xff]
        %v405 = vld [vmem:[%s365 + $0xc0] sm:$0xff]
        %v406 = vld [vmem:[%s365 + $0xc8] sm:$0xff]
        %v407 = vld [vmem:[%s365 + $0xd0] sm:$0xff]
        %v408 = vld [vmem:[%s365 + $0xd8] sm:$0xff]
        %v409 = vld [vmem:[%s365 + $0xe0] sm:$0xff]
        %v410 = vld [vmem:[%s365 + $0xe8] sm:$0xff]
        %v411 = vld [vmem:[%s365 + $0xf0] sm:$0xff]
        %v412 = vld [vmem:[%s365 + $0xf8] sm:$0xff]
        %v413 = vld [vmem:[%s365 + $0x100] sm:$0xff]
        %v414 = vld [vmem:[%s365 + $0x108] sm:$0xff]
        %v415 = vld [vmem:[%s365 + $0x110] sm:$0xff]
        %v416 = vld [vmem:[%s365 + $0x118] sm:$0xff]
        %v417 = vld [vmem:[%s365 + $0x120] sm:$0xff]
        %v418 = vld [vmem:[%s365 + $0x128] sm:$0xff]
        %v419 = vld [vmem:[%s365 + $0x130] sm:$0xff]
        %v420 = vld [vmem:[%s365 + $0x138] sm:$0xff]
        %v421 = vld [vmem:[%s365 + $0x140] sm:$0xff]
        %v422 = vld [vmem:[%s365 + $0x148] sm:$0xff]
        %v423 = vld [vmem:[%s365 + $0x150] sm:$0xff]
        %v424 = vld [vmem:[%s365 + $0x158] sm:$0xff]
        %v425 = vld [vmem:[%s365 + $0x160] sm:$0xff]
        %v426 = vld [vmem:[%s365 + $0x168] sm:$0xff]
        %v427 = vld [vmem:[%s365 + $0x170] sm:$0xff]
        %v428 = vld [vmem:[%s365 + $0x178] sm:$0xff]
        %v429 = vld [vmem:[%s365 + $0x180] sm:$0xff]
        %v430 = vld [vmem:[%s365 + $0x188] sm:$0xff]
        %v431 = vld [vmem:[%s365 + $0x190] sm:$0xff]
        %v432 = vld [vmem:[%s365 + $0x198] sm:$0xff]
        %v433 = vld [vmem:[%s365 + $0x1a0] sm:$0xff]
        %v434 = vld [vmem:[%s365 + $0x1a8] sm:$0xff]
        %v435 = vld [vmem:[%s365 + $0x1b0] sm:$0xff]
        %v436 = vld [vmem:[%s365 + $0x1b8] sm:$0xff]
        %v437 = vld [vmem:[%s365 + $0x1c0] sm:$0xff]
        %v438 = vld [vmem:[%s365 + $0x1c8] sm:$0xff]
        %v439 = vld [vmem:[%s365 + $0x1d0] sm:$0xff]
        %v440 = vld [vmem:[%s365 + $0x1d8] sm:$0xff]
        %v441 = vld [vmem:[%s365 + $0x1e0] sm:$0xff]
        %v442 = vld [vmem:[%s365 + $0x1e8] sm:$0xff]
        %v443 = vld [vmem:[%s365 + $0x1f0] sm:$0xff]
        %v444 = vld [vmem:[%s365 + $0x1f8] sm:$0xff]
        %v445 = vld [vmem:[%s1] sm:$0xff]
        %v446 = vld [vmem:[%s1 + $0x8] sm:$0xff]
        %v447 = vld [vmem:[%s1 + $0x10] sm:$0xff]
        %v448 = vld [vmem:[%s1 + $0x18] sm:$0xff]
        %v449 = vld [vmem:[%s1 + $0x20] sm:$0xff]
        %v450 = vld [vmem:[%s1 + $0x28] sm:$0xff]
        %v451 = vld [vmem:[%s1 + $0x30] sm:$0xff]
        %v452 = vld [vmem:[%s1 + $0x38] sm:$0xff]
        %vm453 = vcmask 523264
        %v455 = vsel %vm453, %v381, 0
        %v458 = vsel %vm453, %v382, 0
        %v461 = vsel %vm453, %v383, 0
        %v464 = vsel %vm453, %v384, 0
        %v467 = vsel %vm453, %v385, 0
        %v470 = vsel %vm453, %v386, 0
        %v473 = vsel %vm453, %v387, 0
        %v476 = vsel %vm453, %v388, 0
        %v479 = vsel %vm453, %v389, 0
        %v482 = vsel %vm453, %v390, 0
        %v485 = vsel %vm453, %v391, 0
        %v488 = vsel %vm453, %v392, 0
        %v491 = vsel %vm453, %v393, 0
        %v494 = vsel %vm453, %v394, 0
        %v497 = vsel %vm453, %v395, 0
        %v500 = vsel %vm453, %v396, 0
        %v503 = vsel %vm453, %v397, 0
        %v506 = vsel %vm453, %v398, 0
        %v509 = vsel %vm453, %v399, 0
        %v512 = vsel %vm453, %v400, 0
        %v515 = vsel %vm453, %v401, 0
        %v518 = vsel %vm453, %v402, 0
        %v521 = vsel %vm453, %v403, 0
        %v524 = vsel %vm453, %v404, 0
        %v527 = vsel %vm453, %v405, 0
        %v530 = vsel %vm453, %v406, 0
        %v533 = vsel %vm453, %v407, 0
        %v536 = vsel %vm453, %v408, 0
        %v539 = vsel %vm453, %v409, 0
        %v542 = vsel %vm453, %v410, 0
        %v545 = vsel %vm453, %v411, 0
        %v548 = vsel %vm453, %v412, 0
        %v551 = vsel %vm453, %v413, 0
        %v554 = vsel %vm453, %v414, 0
        %v557 = vsel %vm453, %v415, 0
        %v560 = vsel %vm453, %v416, 0
        %v563 = vsel %vm453, %v417, 0
        %v566 = vsel %vm453, %v418, 0
        %v569 = vsel %vm453, %v419, 0
        %v572 = vsel %vm453, %v420, 0
        %v575 = vsel %vm453, %v421, 0
        %v578 = vsel %vm453, %v422, 0
        %v581 = vsel %vm453, %v423, 0
        %v584 = vsel %vm453, %v424, 0
        %v587 = vsel %vm453, %v425, 0
        %v590 = vsel %vm453, %v426, 0
        %v593 = vsel %vm453, %v427, 0
        %v596 = vsel %vm453, %v428, 0
        %v599 = vsel %vm453, %v429, 0
        %v602 = vsel %vm453, %v430, 0
        %v605 = vsel %vm453, %v431, 0
        %v608 = vsel %vm453, %v432, 0
        %v611 = vsel %vm453, %v433, 0
        %v614 = vsel %vm453, %v434, 0
        %v617 = vsel %vm453, %v435, 0
        %v620 = vsel %vm453, %v436, 0
        %v623 = vsel %vm453, %v437, 0
        %v626 = vsel %vm453, %v438, 0
        %v629 = vsel %vm453, %v439, 0
        %v632 = vsel %vm453, %v440, 0
        %v635 = vsel %vm453, %v441, 0
        %v638 = vsel %vm453, %v442, 0
        %v641 = vsel %vm453, %v443, 0
        %v644 = vsel %vm453, %v444, 0
        %646 = vmatprep.subr.mxu0 0.0
        %647 = vmatpush1.msra.mxu0 0.0
        %648 = vmatprep.subr.mxu0 0.0
        %649 = vmatpush1.msra.mxu0 0.0
        %650 = vmatprep.subr.mxu0 0.0
        %651 = vmatpush1.msra.mxu0 0.0
        %652 = vmatprep.subr.mxu0 0.0
        %653 = vmatpush1.msra.mxu0 0.0
        %654 = vmatprep.subr.mxu0 0.0
        %655 = vmatpush1.msra.mxu0 0.0
        %656 = vmatprep.subr.mxu0 0.0
        %657 = vmatpush1.msra.mxu0 0.0
        %658 = vmatprep.subr.mxu0 0.0
        %659 = vmatpush1.msra.mxu0 0.0
        %660 = vmatprep.subr.mxu0 0.0
        %661 = vmatpush1.msra.mxu0 0.0
        %662 = vmatprep.subr.mxu0 0.0
        %663 = vmatpush1.msra.mxu0 %v452
        %664 = vmatprep.subr.mxu0 0.0
        %665 = vmatpush1.msra.mxu0 %v451
        %666 = vmatprep.subr.mxu0 0.0
        %667 = vmatpush1.msra.mxu0 %v450
        %668 = vmatprep.subr.mxu0 0.0
        %669 = vmatpush1.msra.mxu0 %v449
        %670 = vmatprep.subr.mxu0 0.0
        %671 = vmatpush1.msra.mxu0 %v448
        %672 = vmatprep.subr.mxu0 0.0
        %673 = vmatpush1.msra.mxu0 %v447
        %674 = vmatprep.subr.mxu0 0.0
        %675 = vmatpush1.msra.mxu0 %v446
        %676 = vmatprep.subr.mxu0 0.0
        %677 = vmatpush1.msra.mxu0 %v445
        %678 = vmatprep.subr.mxu0 0.0
        %679 = vmatpush2.msra.mxu0 0.0
        %680 = vmatprep.subr.mxu0 0.0
        %681 = vmatpush2.msra.mxu0 0.0
        %682 = vmatprep.subr.mxu0 0.0
        %683 = vmatpush2.msra.mxu0 0.0
        %684 = vmatprep.subr.mxu0 0.0
        %685 = vmatpush2.msra.mxu0 0.0
        %686 = vmatprep.subr.mxu0 0.0
        %687 = vmatpush2.msra.mxu0 0.0
        %688 = vmatprep.subr.mxu0 0.0
        %689 = vmatpush2.msra.mxu0 0.0
        %690 = vmatprep.subr.mxu0 0.0
        %691 = vmatpush2.msra.mxu0 0.0
        %692 = vmatprep.subr.mxu0 0.0
        %693 = vmatpush2.msra.mxu0 0.0
        %694 = vmatprep.subr.mxu0 0.0
        %695 = vmatpush2.msra.mxu0 0.0
        %696 = vmatprep.subr.mxu0 0.0
        %697 = vmatpush2.msra.mxu0 0.0
        %698 = vmatprep.subr.mxu0 0.0
        %699 = vmatpush2.msra.mxu0 0.0
        %700 = vmatprep.subr.mxu0 0.0
        %701 = vmatpush2.msra.mxu0 0.0
        %702 = vmatprep.subr.mxu0 0.0
        %703 = vmatpush2.msra.mxu0 0.0
        %704 = vmatprep.subr.mxu0 0.0
        %705 = vmatpush2.msra.mxu0 0.0
        %706 = vmatprep.subr.mxu0 0.0
        %707 = vmatpush2.msra.mxu0 0.0
        %708 = vmatprep.subr.mxu0 0.0
        %709 = vmatpush2.msra.mxu0 0.0
        %710 = vmatprep.mubr.f32.mxu0 0.0
        %711 = vmatmul.mubr.f32.gmra.mxu0 %v455
        %v712 = vpop.f32.mrf.mxu0
        %v713 = vadd.f32 0.0, %v712
        %v714 = vpop.f32.mrf.mxu0
        %715 = vmatprep.mubr.f32.mxu0 0.0
        %716 = vmatmul.mubr.f32.gmra.mxu0 %v458
        %v717 = vpop.f32.mrf.mxu0
        %v718 = vadd.f32 0.0, %v717
        %v719 = vpop.f32.mrf.mxu0
        %720 = vmatprep.mubr.f32.mxu0 0.0
        %721 = vmatmul.mubr.f32.gmra.mxu0 %v461
        %v722 = vpop.f32.mrf.mxu0
        %v723 = vadd.f32 0.0, %v722
        %v724 = vpop.f32.mrf.mxu0
        %725 = vmatprep.mubr.f32.mxu0 0.0
        %726 = vmatmul.mubr.f32.gmra.mxu0 %v464
        %v727 = vpop.f32.mrf.mxu0
        %v728 = vadd.f32 0.0, %v727
        %v729 = vpop.f32.mrf.mxu0
        %730 = vmatprep.mubr.f32.mxu0 0.0
        %731 = vmatmul.mubr.f32.gmra.mxu0 %v467
        %v732 = vpop.f32.mrf.mxu0
        %v733 = vadd.f32 0.0, %v732
        %v734 = vpop.f32.mrf.mxu0
        %735 = vmatprep.mubr.f32.mxu0 0.0
        %736 = vmatmul.mubr.f32.gmra.mxu0 %v470
        %v737 = vpop.f32.mrf.mxu0
        %v738 = vadd.f32 0.0, %v737
        %v739 = vpop.f32.mrf.mxu0
        %740 = vmatprep.mubr.f32.mxu0 0.0
        %741 = vmatmul.mubr.f32.gmra.mxu0 %v473
        %v742 = vpop.f32.mrf.mxu0
        %v743 = vadd.f32 0.0, %v742
        %v744 = vpop.f32.mrf.mxu0
        %745 = vmatprep.mubr.f32.mxu0 0.0
        %746 = vmatmul.mubr.f32.gmra.mxu0 %v476
        %v747 = vpop.f32.mrf.mxu0
        %v748 = vadd.f32 0.0, %v747
        %v749 = vpop.f32.mrf.mxu0
        %750 = vmatprep.mubr.f32.mxu0 0.0
        %751 = vmatmul.mubr.f32.gmra.mxu0 %v479
        %v752 = vpop.f32.mrf.mxu0
        %v753 = vadd.f32 0.0, %v752
        %v754 = vpop.f32.mrf.mxu0
        %755 = vmatprep.mubr.f32.mxu0 0.0
        %756 = vmatmul.mubr.f32.gmra.mxu0 %v482
        %v757 = vpop.f32.mrf.mxu0
        %v758 = vadd.f32 0.0, %v757
        %v759 = vpop.f32.mrf.mxu0
        %760 = vmatprep.mubr.f32.mxu0 0.0
        %761 = vmatmul.mubr.f32.gmra.mxu0 %v485
        %v762 = vpop.f32.mrf.mxu0
        %v763 = vadd.f32 0.0, %v762
        %v764 = vpop.f32.mrf.mxu0
        %765 = vmatprep.mubr.f32.mxu0 0.0
        %766 = vmatmul.mubr.f32.gmra.mxu0 %v488
        %v767 = vpop.f32.mrf.mxu0
        %v768 = vadd.f32 0.0, %v767
        %v769 = vpop.f32.mrf.mxu0
        %770 = vmatprep.mubr.f32.mxu0 0.0
        %771 = vmatmul.mubr.f32.gmra.mxu0 %v491
        %v772 = vpop.f32.mrf.mxu0
        %v773 = vadd.f32 0.0, %v772
        %v774 = vpop.f32.mrf.mxu0
        %775 = vmatprep.mubr.f32.mxu0 0.0
        %776 = vmatmul.mubr.f32.gmra.mxu0 %v494
        %v777 = vpop.f32.mrf.mxu0
        %v778 = vadd.f32 0.0, %v777
        %v779 = vpop.f32.mrf.mxu0
        %780 = vmatprep.mubr.f32.mxu0 0.0
        %781 = vmatmul.mubr.f32.gmra.mxu0 %v497
        %v782 = vpop.f32.mrf.mxu0
        %v783 = vadd.f32 0.0, %v782
        %v784 = vpop.f32.mrf.mxu0
        %785 = vmatprep.mubr.f32.mxu0 0.0
        %786 = vmatmul.mubr.f32.gmra.mxu0 %v500
        %v787 = vpop.f32.mrf.mxu0
        %v788 = vadd.f32 0.0, %v787
        %v789 = vpop.f32.mrf.mxu0
        %790 = vmatprep.mubr.f32.mxu0 0.0
        %791 = vmatmul.mubr.f32.gmra.mxu0 %v503
        %v792 = vpop.f32.mrf.mxu0
        %v793 = vadd.f32 0.0, %v792
        %v794 = vpop.f32.mrf.mxu0
        %795 = vmatprep.mubr.f32.mxu0 0.0
        %796 = vmatmul.mubr.f32.gmra.mxu0 %v506
        %v797 = vpop.f32.mrf.mxu0
        %v798 = vadd.f32 0.0, %v797
        %v799 = vpop.f32.mrf.mxu0
        %800 = vmatprep.mubr.f32.mxu0 0.0
        %801 = vmatmul.mubr.f32.gmra.mxu0 %v509
        %v802 = vpop.f32.mrf.mxu0
        %v803 = vadd.f32 0.0, %v802
        %v804 = vpop.f32.mrf.mxu0
        %805 = vmatprep.mubr.f32.mxu0 0.0
        %806 = vmatmul.mubr.f32.gmra.mxu0 %v512
        %v807 = vpop.f32.mrf.mxu0
        %v808 = vadd.f32 0.0, %v807
        %v809 = vpop.f32.mrf.mxu0
        %810 = vmatprep.mubr.f32.mxu0 0.0
        %811 = vmatmul.mubr.f32.gmra.mxu0 %v515
        %v812 = vpop.f32.mrf.mxu0
        %v813 = vadd.f32 0.0, %v812
        %v814 = vpop.f32.mrf.mxu0
        %815 = vmatprep.mubr.f32.mxu0 0.0
        %816 = vmatmul.mubr.f32.gmra.mxu0 %v518
        %v817 = vpop.f32.mrf.mxu0
        %v818 = vadd.f32 0.0, %v817
        %v819 = vpop.f32.mrf.mxu0
        %820 = vmatprep.mubr.f32.mxu0 0.0
        %821 = vmatmul.mubr.f32.gmra.mxu0 %v521
        %v822 = vpop.f32.mrf.mxu0
        %v823 = vadd.f32 0.0, %v822
        %v824 = vpop.f32.mrf.mxu0
        %825 = vmatprep.mubr.f32.mxu0 0.0
        %826 = vmatmul.mubr.f32.gmra.mxu0 %v524
        %v827 = vpop.f32.mrf.mxu0
        %v828 = vadd.f32 0.0, %v827
        %v829 = vpop.f32.mrf.mxu0
        %830 = vmatprep.mubr.f32.mxu0 0.0
        %831 = vmatmul.mubr.f32.gmra.mxu0 %v527
        %v832 = vpop.f32.mrf.mxu0
        %v833 = vadd.f32 0.0, %v832
        %v834 = vpop.f32.mrf.mxu0
        %835 = vmatprep.mubr.f32.mxu0 0.0
        %836 = vmatmul.mubr.f32.gmra.mxu0 %v530
        %v837 = vpop.f32.mrf.mxu0
        %v838 = vadd.f32 0.0, %v837
        %v839 = vpop.f32.mrf.mxu0
        %840 = vmatprep.mubr.f32.mxu0 0.0
        %841 = vmatmul.mubr.f32.gmra.mxu0 %v533
        %v842 = vpop.f32.mrf.mxu0
        %v843 = vadd.f32 0.0, %v842
        %v844 = vpop.f32.mrf.mxu0
        %845 = vmatprep.mubr.f32.mxu0 0.0
        %846 = vmatmul.mubr.f32.gmra.mxu0 %v536
        %v847 = vpop.f32.mrf.mxu0
        %v848 = vadd.f32 0.0, %v847
        %v849 = vpop.f32.mrf.mxu0
        %850 = vmatprep.mubr.f32.mxu0 0.0
        %851 = vmatmul.mubr.f32.gmra.mxu0 %v539
        %v852 = vpop.f32.mrf.mxu0
        %v853 = vadd.f32 0.0, %v852
        %v854 = vpop.f32.mrf.mxu0
        %855 = vmatprep.mubr.f32.mxu0 0.0
        %856 = vmatmul.mubr.f32.gmra.mxu0 %v542
        %v857 = vpop.f32.mrf.mxu0
        %v858 = vadd.f32 0.0, %v857
        %v859 = vpop.f32.mrf.mxu0
        %860 = vmatprep.mubr.f32.mxu0 0.0
        %861 = vmatmul.mubr.f32.gmra.mxu0 %v545
        %v862 = vpop.f32.mrf.mxu0
        %v863 = vadd.f32 0.0, %v862
        %v864 = vpop.f32.mrf.mxu0
        %865 = vmatprep.mubr.f32.mxu0 0.0
        %866 = vmatmul.mubr.f32.gmra.mxu0 %v548
        %v867 = vpop.f32.mrf.mxu0
        %v868 = vadd.f32 0.0, %v867
        %v869 = vpop.f32.mrf.mxu0
        %870 = vmatprep.mubr.f32.mxu0 0.0
        %871 = vmatmul.mubr.f32.gmra.mxu0 %v551
        %v872 = vpop.f32.mrf.mxu0
        %v873 = vadd.f32 0.0, %v872
        %v874 = vpop.f32.mrf.mxu0
        %875 = vmatprep.mubr.f32.mxu0 0.0
        %876 = vmatmul.mubr.f32.gmra.mxu0 %v554
        %v877 = vpop.f32.mrf.mxu0
        %v878 = vadd.f32 0.0, %v877
        %v879 = vpop.f32.mrf.mxu0
        %880 = vmatprep.mubr.f32.mxu0 0.0
        %881 = vmatmul.mubr.f32.gmra.mxu0 %v557
        %v882 = vpop.f32.mrf.mxu0
        %v883 = vadd.f32 0.0, %v882
        %v884 = vpop.f32.mrf.mxu0
        %885 = vmatprep.mubr.f32.mxu0 0.0
        %886 = vmatmul.mubr.f32.gmra.mxu0 %v560
        %v887 = vpop.f32.mrf.mxu0
        %v888 = vadd.f32 0.0, %v887
        %v889 = vpop.f32.mrf.mxu0
        %890 = vmatprep.mubr.f32.mxu0 0.0
        %891 = vmatmul.mubr.f32.gmra.mxu0 %v563
        %v892 = vpop.f32.mrf.mxu0
        %v893 = vadd.f32 0.0, %v892
        %v894 = vpop.f32.mrf.mxu0
        %895 = vmatprep.mubr.f32.mxu0 0.0
        %896 = vmatmul.mubr.f32.gmra.mxu0 %v566
        %v897 = vpop.f32.mrf.mxu0
        %v898 = vadd.f32 0.0, %v897
        %v899 = vpop.f32.mrf.mxu0
        %900 = vmatprep.mubr.f32.mxu0 0.0
        %901 = vmatmul.mubr.f32.gmra.mxu0 %v569
        %v902 = vpop.f32.mrf.mxu0
        %v903 = vadd.f32 0.0, %v902
        %v904 = vpop.f32.mrf.mxu0
        %905 = vmatprep.mubr.f32.mxu0 0.0
        %906 = vmatmul.mubr.f32.gmra.mxu0 %v572
        %v907 = vpop.f32.mrf.mxu0
        %v908 = vadd.f32 0.0, %v907
        %v909 = vpop.f32.mrf.mxu0
        %910 = vmatprep.mubr.f32.mxu0 0.0
        %911 = vmatmul.mubr.f32.gmra.mxu0 %v575
        %v912 = vpop.f32.mrf.mxu0
        %v913 = vadd.f32 0.0, %v912
        %v914 = vpop.f32.mrf.mxu0
        %915 = vmatprep.mubr.f32.mxu0 0.0
        %916 = vmatmul.mubr.f32.gmra.mxu0 %v578
        %v917 = vpop.f32.mrf.mxu0
        %v918 = vadd.f32 0.0, %v917
        %v919 = vpop.f32.mrf.mxu0
        %920 = vmatprep.mubr.f32.mxu0 0.0
        %921 = vmatmul.mubr.f32.gmra.mxu0 %v581
        %v922 = vpop.f32.mrf.mxu0
        %v923 = vadd.f32 0.0, %v922
        %v924 = vpop.f32.mrf.mxu0
        %925 = vmatprep.mubr.f32.mxu0 0.0
        %926 = vmatmul.mubr.f32.gmra.mxu0 %v584
        %v927 = vpop.f32.mrf.mxu0
        %v928 = vadd.f32 0.0, %v927
        %v929 = vpop.f32.mrf.mxu0
        %930 = vmatprep.mubr.f32.mxu0 0.0
        %931 = vmatmul.mubr.f32.gmra.mxu0 %v587
        %v932 = vpop.f32.mrf.mxu0
        %v933 = vadd.f32 0.0, %v932
        %v934 = vpop.f32.mrf.mxu0
        %935 = vmatprep.mubr.f32.mxu0 0.0
        %936 = vmatmul.mubr.f32.gmra.mxu0 %v590
        %v937 = vpop.f32.mrf.mxu0
        %v938 = vadd.f32 0.0, %v937
        %v939 = vpop.f32.mrf.mxu0
        %940 = vmatprep.mubr.f32.mxu0 0.0
        %941 = vmatmul.mubr.f32.gmra.mxu0 %v593
        %v942 = vpop.f32.mrf.mxu0
        %v943 = vadd.f32 0.0, %v942
        %v944 = vpop.f32.mrf.mxu0
        %945 = vmatprep.mubr.f32.mxu0 0.0
        %946 = vmatmul.mubr.f32.gmra.mxu0 %v596
        %v947 = vpop.f32.mrf.mxu0
        %v948 = vadd.f32 0.0, %v947
        %v949 = vpop.f32.mrf.mxu0
        %950 = vmatprep.mubr.f32.mxu0 0.0
        %951 = vmatmul.mubr.f32.gmra.mxu0 %v599
        %v952 = vpop.f32.mrf.mxu0
        %v953 = vadd.f32 0.0, %v952
        %v954 = vpop.f32.mrf.mxu0
        %955 = vmatprep.mubr.f32.mxu0 0.0
        %956 = vmatmul.mubr.f32.gmra.mxu0 %v602
        %v957 = vpop.f32.mrf.mxu0
        %v958 = vadd.f32 0.0, %v957
        %v959 = vpop.f32.mrf.mxu0
        %960 = vmatprep.mubr.f32.mxu0 0.0
        %961 = vmatmul.mubr.f32.gmra.mxu0 %v605
        %v962 = vpop.f32.mrf.mxu0
        %v963 = vadd.f32 0.0, %v962
        %v964 = vpop.f32.mrf.mxu0
        %965 = vmatprep.mubr.f32.mxu0 0.0
        %966 = vmatmul.mubr.f32.gmra.mxu0 %v608
        %v967 = vpop.f32.mrf.mxu0
        %v968 = vadd.f32 0.0, %v967
        %v969 = vpop.f32.mrf.mxu0
        %970 = vmatprep.mubr.f32.mxu0 0.0
        %971 = vmatmul.mubr.f32.gmra.mxu0 %v611
        %v972 = vpop.f32.mrf.mxu0
        %v973 = vadd.f32 0.0, %v972
        %v974 = vpop.f32.mrf.mxu0
        %975 = vmatprep.mubr.f32.mxu0 0.0
        %976 = vmatmul.mubr.f32.gmra.mxu0 %v614
        %v977 = vpop.f32.mrf.mxu0
        %v978 = vadd.f32 0.0, %v977
        %v979 = vpop.f32.mrf.mxu0
        %980 = vmatprep.mubr.f32.mxu0 0.0
        %981 = vmatmul.mubr.f32.gmra.mxu0 %v617
        %v982 = vpop.f32.mrf.mxu0
        %v983 = vadd.f32 0.0, %v982
        %v984 = vpop.f32.mrf.mxu0
        %985 = vmatprep.mubr.f32.mxu0 0.0
        %986 = vmatmul.mubr.f32.gmra.mxu0 %v620
        %v987 = vpop.f32.mrf.mxu0
        %v988 = vadd.f32 0.0, %v987
        %v989 = vpop.f32.mrf.mxu0
        %990 = vmatprep.mubr.f32.mxu0 0.0
        %991 = vmatmul.mubr.f32.gmra.mxu0 %v623
        %v992 = vpop.f32.mrf.mxu0
        %v993 = vadd.f32 0.0, %v992
        %v994 = vpop.f32.mrf.mxu0
        %995 = vmatprep.mubr.f32.mxu0 0.0
        %996 = vmatmul.mubr.f32.gmra.mxu0 %v626
        %v997 = vpop.f32.mrf.mxu0
        %v998 = vadd.f32 0.0, %v997
        %v999 = vpop.f32.mrf.mxu0
        %1000 = vmatprep.mubr.f32.mxu0 0.0
        %1001 = vmatmul.mubr.f32.gmra.mxu0 %v629
        %v1002 = vpop.f32.mrf.mxu0
        %v1003 = vadd.f32 0.0, %v1002
        %v1004 = vpop.f32.mrf.mxu0
        %1005 = vmatprep.mubr.f32.mxu0 0.0
        %1006 = vmatmul.mubr.f32.gmra.mxu0 %v632
        %v1007 = vpop.f32.mrf.mxu0
        %v1008 = vadd.f32 0.0, %v1007
        %v1009 = vpop.f32.mrf.mxu0
        %1010 = vmatprep.mubr.f32.mxu0 0.0
        %1011 = vmatmul.mubr.f32.gmra.mxu0 %v635
        %v1012 = vpop.f32.mrf.mxu0
        %v1013 = vadd.f32 0.0, %v1012
        %v1014 = vpop.f32.mrf.mxu0
        %1015 = vmatprep.mubr.f32.mxu0 0.0
        %1016 = vmatmul.mubr.f32.gmra.mxu0 %v638
        %v1017 = vpop.f32.mrf.mxu0
        %v1018 = vadd.f32 0.0, %v1017
        %v1019 = vpop.f32.mrf.mxu0
        %1020 = vmatprep.mubr.f32.mxu0 0.0
        %1021 = vmatmul.mubr.f32.gmra.mxu0 %v641
        %v1022 = vpop.f32.mrf.mxu0
        %v1023 = vadd.f32 0.0, %v1022
        %v1024 = vpop.f32.mrf.mxu0
        %1025 = vmatprep.mubr.f32.mxu0 0.0
        %1026 = vmatmul.mubr.f32.gmra.mxu0 %v644
        %v1027 = vpop.f32.mrf.mxu0
        %v1028 = vadd.f32 0.0, %v1027
        %v1029 = vpop.f32.mrf.mxu0
        %1030 = vdwg.mxu0
        %v1031 = vpack.c.bf16 %v718, %v713
        %v1032 = vpack.c.bf16 %v728, %v723
        %v1033 = vpack.c.bf16 %v738, %v733
        %v1034 = vpack.c.bf16 %v748, %v743
        %v1035 = vpack.c.bf16 %v758, %v753
        %v1036 = vpack.c.bf16 %v768, %v763
        %v1037 = vpack.c.bf16 %v778, %v773
        %v1038 = vpack.c.bf16 %v788, %v783
        %v1039 = vpack.c.bf16 %v798, %v793
        %v1040 = vpack.c.bf16 %v808, %v803
        %v1041 = vpack.c.bf16 %v818, %v813
        %v1042 = vpack.c.bf16 %v828, %v823
        %v1043 = vpack.c.bf16 %v838, %v833
        %v1044 = vpack.c.bf16 %v848, %v843
        %v1045 = vpack.c.bf16 %v858, %v853
        %v1046 = vpack.c.bf16 %v868, %v863
        %v1047 = vpack.c.bf16 %v878, %v873
        %v1048 = vpack.c.bf16 %v888, %v883
        %v1049 = vpack.c.bf16 %v898, %v893
        %v1050 = vpack.c.bf16 %v908, %v903
        %v1051 = vpack.c.bf16 %v918, %v913
        %v1052 = vpack.c.bf16 %v928, %v923
        %v1053 = vpack.c.bf16 %v938, %v933
        %v1054 = vpack.c.bf16 %v948, %v943
        %v1055 = vpack.c.bf16 %v958, %v953
        %v1056 = vpack.c.bf16 %v968, %v963
        %v1057 = vpack.c.bf16 %v978, %v973
        %v1058 = vpack.c.bf16 %v988, %v983
        %v1059 = vpack.c.bf16 %v998, %v993
        %v1060 = vpack.c.bf16 %v1008, %v1003
        %v1061 = vpack.c.bf16 %v1018, %v1013
        %v1062 = vpack.c.bf16 %v1028, %v1023
        %v1095 = vunpack.c.l.b16 %v1031
        %v1096 = vunpack.c.h.b16 %v1031
        %v1097 = vunpack.c.l.b16 %v1032
        %v1098 = vunpack.c.h.b16 %v1032
        %v1099 = vunpack.c.l.b16 %v1033
        %v1100 = vunpack.c.h.b16 %v1033
        %v1101 = vunpack.c.l.b16 %v1034
        %v1102 = vunpack.c.h.b16 %v1034
        %v1103 = vunpack.c.l.b16 %v1035
        %v1104 = vunpack.c.h.b16 %v1035
        %v1105 = vunpack.c.l.b16 %v1036
        %v1106 = vunpack.c.h.b16 %v1036
        %v1107 = vunpack.c.l.b16 %v1037
        %v1108 = vunpack.c.h.b16 %v1037
        %v1109 = vunpack.c.l.b16 %v1038
        %v1110 = vunpack.c.h.b16 %v1038
        %v1111 = vunpack.c.l.b16 %v1039
        %v1112 = vunpack.c.h.b16 %v1039
        %v1113 = vunpack.c.l.b16 %v1040
        %v1114 = vunpack.c.h.b16 %v1040
        %v1115 = vunpack.c.l.b16 %v1041
        %v1116 = vunpack.c.h.b16 %v1041
        %v1117 = vunpack.c.l.b16 %v1042
        %v1118 = vunpack.c.h.b16 %v1042
        %v1119 = vunpack.c.l.b16 %v1043
        %v1120 = vunpack.c.h.b16 %v1043
        %v1121 = vunpack.c.l.b16 %v1044
        %v1122 = vunpack.c.h.b16 %v1044
        %v1123 = vunpack.c.l.b16 %v1045
        %v1124 = vunpack.c.h.b16 %v1045
        %v1125 = vunpack.c.l.b16 %v1046
        %v1126 = vunpack.c.h.b16 %v1046
        %v1127 = vunpack.c.l.b16 %v1047
        %v1128 = vunpack.c.h.b16 %v1047
        %v1129 = vunpack.c.l.b16 %v1048
        %v1130 = vunpack.c.h.b16 %v1048
        %v1131 = vunpack.c.l.b16 %v1049
        %v1132 = vunpack.c.h.b16 %v1049
        %v1133 = vunpack.c.l.b16 %v1050
        %v1134 = vunpack.c.h.b16 %v1050
        %v1135 = vunpack.c.l.b16 %v1051
        %v1136 = vunpack.c.h.b16 %v1051
        %v1137 = vunpack.c.l.b16 %v1052
        %v1138 = vunpack.c.h.b16 %v1052
        %v1139 = vunpack.c.l.b16 %v1053
        %v1140 = vunpack.c.h.b16 %v1053
        %v1141 = vunpack.c.l.b16 %v1054
        %v1142 = vunpack.c.h.b16 %v1054
        %v1143 = vunpack.c.l.b16 %v1055
        %v1144 = vunpack.c.h.b16 %v1055
        %v1145 = vunpack.c.l.b16 %v1056
        %v1146 = vunpack.c.h.b16 %v1056
        %v1147 = vunpack.c.l.b16 %v1057
        %v1148 = vunpack.c.h.b16 %v1057
        %v1149 = vunpack.c.l.b16 %v1058
        %v1150 = vunpack.c.h.b16 %v1058
        %v1151 = vunpack.c.l.b16 %v1059
        %v1152 = vunpack.c.h.b16 %v1059
        %v1153 = vunpack.c.l.b16 %v1060
        %v1154 = vunpack.c.h.b16 %v1060
        %v1155 = vunpack.c.l.b16 %v1061
        %v1156 = vunpack.c.h.b16 %v1061
        %v1157 = vunpack.c.l.b16 %v1062
        %v1158 = vunpack.c.h.b16 %v1062
        %v1159 = vpack.c.b16 %v1095, %v1095
        %v1160 = vpack.c.b16 %v1096, %v1096
        %v1161 = vpack.c.b16 %v1097, %v1097
        %v1162 = vpack.c.b16 %v1098, %v1098
        %v1163 = vpack.c.b16 %v1099, %v1099
        %v1164 = vpack.c.b16 %v1100, %v1100
        %v1165 = vpack.c.b16 %v1101, %v1101
        %v1166 = vpack.c.b16 %v1102, %v1102
        %v1167 = vpack.c.b16 %v1103, %v1103
        %v1168 = vpack.c.b16 %v1104, %v1104
        %v1169 = vpack.c.b16 %v1105, %v1105
        %v1170 = vpack.c.b16 %v1106, %v1106
        %v1171 = vpack.c.b16 %v1107, %v1107
        %v1172 = vpack.c.b16 %v1108, %v1108
        %v1173 = vpack.c.b16 %v1109, %v1109
        %v1174 = vpack.c.b16 %v1110, %v1110
        %v1175 = vpack.c.b16 %v1111, %v1111
        %v1176 = vpack.c.b16 %v1112, %v1112
        %v1177 = vpack.c.b16 %v1113, %v1113
        %v1178 = vpack.c.b16 %v1114, %v1114
        %v1179 = vpack.c.b16 %v1115, %v1115
        %v1180 = vpack.c.b16 %v1116, %v1116
        %v1181 = vpack.c.b16 %v1117, %v1117
        %v1182 = vpack.c.b16 %v1118, %v1118
        %v1183 = vpack.c.b16 %v1119, %v1119
        %v1184 = vpack.c.b16 %v1120, %v1120
        %v1185 = vpack.c.b16 %v1121, %v1121
        %v1186 = vpack.c.b16 %v1122, %v1122
        %v1187 = vpack.c.b16 %v1123, %v1123
        %v1188 = vpack.c.b16 %v1124, %v1124
        %v1189 = vpack.c.b16 %v1125, %v1125
        %v1190 = vpack.c.b16 %v1126, %v1126
        %v1191 = vpack.c.b16 %v1127, %v1127
        %v1192 = vpack.c.b16 %v1128, %v1128
        %v1193 = vpack.c.b16 %v1129, %v1129
        %v1194 = vpack.c.b16 %v1130, %v1130
        %v1195 = vpack.c.b16 %v1131, %v1131
        %v1196 = vpack.c.b16 %v1132, %v1132
        %v1197 = vpack.c.b16 %v1133, %v1133
        %v1198 = vpack.c.b16 %v1134, %v1134
        %v1199 = vpack.c.b16 %v1135, %v1135
        %v1200 = vpack.c.b16 %v1136, %v1136
        %v1201 = vpack.c.b16 %v1137, %v1137
        %v1202 = vpack.c.b16 %v1138, %v1138
        %v1203 = vpack.c.b16 %v1139, %v1139
        %v1204 = vpack.c.b16 %v1140, %v1140
        %v1205 = vpack.c.b16 %v1141, %v1141
        %v1206 = vpack.c.b16 %v1142, %v1142
        %v1207 = vpack.c.b16 %v1143, %v1143
        %v1208 = vpack.c.b16 %v1144, %v1144
        %v1209 = vpack.c.b16 %v1145, %v1145
        %v1210 = vpack.c.b16 %v1146, %v1146
        %v1211 = vpack.c.b16 %v1147, %v1147
        %v1212 = vpack.c.b16 %v1148, %v1148
        %v1213 = vpack.c.b16 %v1149, %v1149
        %v1214 = vpack.c.b16 %v1150, %v1150
        %v1215 = vpack.c.b16 %v1151, %v1151
        %v1216 = vpack.c.b16 %v1152, %v1152
        %v1217 = vpack.c.b16 %v1153, %v1153
        %v1218 = vpack.c.b16 %v1154, %v1154
        %v1219 = vpack.c.b16 %v1155, %v1155
        %v1220 = vpack.c.b16 %v1156, %v1156
        %v1221 = vpack.c.b16 %v1157, %v1157
        %v1222 = vpack.c.b16 %v1158, %v1158
        %1287 = vst [vmem:[%s346] sm:$0xf] %v1159
        %1288 = vst [vmem:[%s346 + $0x4] sm:$0xf] %v1160
        %1289 = vst [vmem:[%s346 + $0x8] sm:$0xf] %v1161
        %1290 = vst [vmem:[%s346 + $0xc] sm:$0xf] %v1162
        %1291 = vst [vmem:[%s346 + $0x10] sm:$0xf] %v1163
        %1292 = vst [vmem:[%s346 + $0x14] sm:$0xf] %v1164
        %1293 = vst [vmem:[%s346 + $0x18] sm:$0xf] %v1165
        %1294 = vst [vmem:[%s346 + $0x1c] sm:$0xf] %v1166
        %1295 = vst [vmem:[%s346 + $0x20] sm:$0xf] %v1167
        %1296 = vst [vmem:[%s346 + $0x24] sm:$0xf] %v1168
        %1297 = vst [vmem:[%s346 + $0x28] sm:$0xf] %v1169
        %1298 = vst [vmem:[%s346 + $0x2c] sm:$0xf] %v1170
        %1299 = vst [vmem:[%s346 + $0x30] sm:$0xf] %v1171
        %1300 = vst [vmem:[%s346 + $0x34] sm:$0xf] %v1172
        %1301 = vst [vmem:[%s346 + $0x38] sm:$0xf] %v1173
        %1302 = vst [vmem:[%s346 + $0x3c] sm:$0xf] %v1174
        %1303 = vst [vmem:[%s346 + $0x40] sm:$0xf] %v1175
        %1304 = vst [vmem:[%s346 + $0x44] sm:$0xf] %v1176
        %1305 = vst [vmem:[%s346 + $0x48] sm:$0xf] %v1177
        %1306 = vst [vmem:[%s346 + $0x4c] sm:$0xf] %v1178
        %1307 = vst [vmem:[%s346 + $0x50] sm:$0xf] %v1179
        %1308 = vst [vmem:[%s346 + $0x54] sm:$0xf] %v1180
        %1309 = vst [vmem:[%s346 + $0x58] sm:$0xf] %v1181
        %1310 = vst [vmem:[%s346 + $0x5c] sm:$0xf] %v1182
        %1311 = vst [vmem:[%s346 + $0x60] sm:$0xf] %v1183
        %1312 = vst [vmem:[%s346 + $0x64] sm:$0xf] %v1184
        %1313 = vst [vmem:[%s346 + $0x68] sm:$0xf] %v1185
        %1314 = vst [vmem:[%s346 + $0x6c] sm:$0xf] %v1186
        %1315 = vst [vmem:[%s346 + $0x70] sm:$0xf] %v1187
        %1316 = vst [vmem:[%s346 + $0x74] sm:$0xf] %v1188
        %1317 = vst [vmem:[%s346 + $0x78] sm:$0xf] %v1189
        %1318 = vst [vmem:[%s346 + $0x7c] sm:$0xf] %v1190
        %1319 = vst [vmem:[%s346 + $0x80] sm:$0xf] %v1191
        %1320 = vst [vmem:[%s346 + $0x84] sm:$0xf] %v1192
        %1321 = vst [vmem:[%s346 + $0x88] sm:$0xf] %v1193
        %1322 = vst [vmem:[%s346 + $0x8c] sm:$0xf] %v1194
        %1323 = vst [vmem:[%s346 + $0x90] sm:$0xf] %v1195
        %1324 = vst [vmem:[%s346 + $0x94] sm:$0xf] %v1196
        %1325 = vst [vmem:[%s346 + $0x98] sm:$0xf] %v1197
        %1326 = vst [vmem:[%s346 + $0x9c] sm:$0xf] %v1198
        %1327 = vst [vmem:[%s346 + $0xa0] sm:$0xf] %v1199
        %1328 = vst [vmem:[%s346 + $0xa4] sm:$0xf] %v1200
        %1329 = vst [vmem:[%s346 + $0xa8] sm:$0xf] %v1201
        %1330 = vst [vmem:[%s346 + $0xac] sm:$0xf] %v1202
        %1331 = vst [vmem:[%s346 + $0xb0] sm:$0xf] %v1203
        %1332 = vst [vmem:[%s346 + $0xb4] sm:$0xf] %v1204
        %1333 = vst [vmem:[%s346 + $0xb8] sm:$0xf] %v1205
        %1334 = vst [vmem:[%s346 + $0xbc] sm:$0xf] %v1206
        %1335 = vst [vmem:[%s346 + $0xc0] sm:$0xf] %v1207
        %1336 = vst [vmem:[%s346 + $0xc4] sm:$0xf] %v1208
        %1337 = vst [vmem:[%s346 + $0xc8] sm:$0xf] %v1209
        %1338 = vst [vmem:[%s346 + $0xcc] sm:$0xf] %v1210
        %1339 = vst [vmem:[%s346 + $0xd0] sm:$0xf] %v1211
        %1340 = vst [vmem:[%s346 + $0xd4] sm:$0xf] %v1212
        %1341 = vst [vmem:[%s346 + $0xd8] sm:$0xf] %v1213
        %1342 = vst [vmem:[%s346 + $0xdc] sm:$0xf] %v1214
        %1343 = vst [vmem:[%s346 + $0xe0] sm:$0xf] %v1215
        %1344 = vst [vmem:[%s346 + $0xe4] sm:$0xf] %v1216
        %1345 = vst [vmem:[%s346 + $0xe8] sm:$0xf] %v1217
        %1346 = vst [vmem:[%s346 + $0xec] sm:$0xf] %v1218
        %1347 = vst [vmem:[%s346 + $0xf0] sm:$0xf] %v1219
        %1348 = vst [vmem:[%s346 + $0xf4] sm:$0xf] %v1220
        %1349 = vst [vmem:[%s346 + $0xf8] sm:$0xf] %v1221
        %1350 = vst [vmem:[%s346 + $0xfc] sm:$0xf] %v1222
        %v1351 = vld [vmem:[%s371] sm:$0xff]
        %v1352 = vld [vmem:[%s371 + $0x8] sm:$0xff]
        %v1353 = vld [vmem:[%s371 + $0x10] sm:$0xff]
        %v1354 = vld [vmem:[%s371 + $0x18] sm:$0xff]
        %v1355 = vld [vmem:[%s371 + $0x20] sm:$0xff]
        %v1356 = vld [vmem:[%s371 + $0x28] sm:$0xff]
        %v1357 = vld [vmem:[%s371 + $0x30] sm:$0xff]
        %v1358 = vld [vmem:[%s371 + $0x38] sm:$0xff]
        %v1359 = vld [vmem:[%s371 + $0x40] sm:$0xff]
        %v1360 = vld [vmem:[%s371 + $0x48] sm:$0xff]
        %v1361 = vld [vmem:[%s371 + $0x50] sm:$0xff]
        %v1362 = vld [vmem:[%s371 + $0x58] sm:$0xff]
        %v1363 = vld [vmem:[%s371 + $0x60] sm:$0xff]
        %v1364 = vld [vmem:[%s371 + $0x68] sm:$0xff]
        %v1365 = vld [vmem:[%s371 + $0x70] sm:$0xff]
        %v1366 = vld [vmem:[%s371 + $0x78] sm:$0xff]
        %v1367 = vld [vmem:[%s371 + $0x80] sm:$0xff]
        %v1368 = vld [vmem:[%s371 + $0x88] sm:$0xff]
        %v1369 = vld [vmem:[%s371 + $0x90] sm:$0xff]
        %v1370 = vld [vmem:[%s371 + $0x98] sm:$0xff]
        %v1371 = vld [vmem:[%s371 + $0xa0] sm:$0xff]
        %v1372 = vld [vmem:[%s371 + $0xa8] sm:$0xff]
        %v1373 = vld [vmem:[%s371 + $0xb0] sm:$0xff]
        %v1374 = vld [vmem:[%s371 + $0xb8] sm:$0xff]
        %v1375 = vld [vmem:[%s371 + $0xc0] sm:$0xff]
        %v1376 = vld [vmem:[%s371 + $0xc8] sm:$0xff]
        %v1377 = vld [vmem:[%s371 + $0xd0] sm:$0xff]
        %v1378 = vld [vmem:[%s371 + $0xd8] sm:$0xff]
        %v1379 = vld [vmem:[%s371 + $0xe0] sm:$0xff]
        %v1380 = vld [vmem:[%s371 + $0xe8] sm:$0xff]
        %v1381 = vld [vmem:[%s371 + $0xf0] sm:$0xff]
        %v1382 = vld [vmem:[%s371 + $0xf8] sm:$0xff]
        %v1383 = vld [vmem:[%s371 + $0x100] sm:$0xff]
        %v1384 = vld [vmem:[%s371 + $0x108] sm:$0xff]
        %v1385 = vld [vmem:[%s371 + $0x110] sm:$0xff]
        %v1386 = vld [vmem:[%s371 + $0x118] sm:$0xff]
        %v1387 = vld [vmem:[%s371 + $0x120] sm:$0xff]
        %v1388 = vld [vmem:[%s371 + $0x128] sm:$0xff]
        %v1389 = vld [vmem:[%s371 + $0x130] sm:$0xff]
        %v1390 = vld [vmem:[%s371 + $0x138] sm:$0xff]
        %v1391 = vld [vmem:[%s371 + $0x140] sm:$0xff]
        %v1392 = vld [vmem:[%s371 + $0x148] sm:$0xff]
        %v1393 = vld [vmem:[%s371 + $0x150] sm:$0xff]
        %v1394 = vld [vmem:[%s371 + $0x158] sm:$0xff]
        %v1395 = vld [vmem:[%s371 + $0x160] sm:$0xff]
        %v1396 = vld [vmem:[%s371 + $0x168] sm:$0xff]
        %v1397 = vld [vmem:[%s371 + $0x170] sm:$0xff]
        %v1398 = vld [vmem:[%s371 + $0x178] sm:$0xff]
        %v1399 = vld [vmem:[%s371 + $0x180] sm:$0xff]
        %v1400 = vld [vmem:[%s371 + $0x188] sm:$0xff]
        %v1401 = vld [vmem:[%s371 + $0x190] sm:$0xff]
        %v1402 = vld [vmem:[%s371 + $0x198] sm:$0xff]
        %v1403 = vld [vmem:[%s371 + $0x1a0] sm:$0xff]
        %v1404 = vld [vmem:[%s371 + $0x1a8] sm:$0xff]
        %v1405 = vld [vmem:[%s371 + $0x1b0] sm:$0xff]
        %v1406 = vld [vmem:[%s371 + $0x1b8] sm:$0xff]
        %v1407 = vld [vmem:[%s371 + $0x1c0] sm:$0xff]
        %v1408 = vld [vmem:[%s371 + $0x1c8] sm:$0xff]
        %v1409 = vld [vmem:[%s371 + $0x1d0] sm:$0xff]
        %v1410 = vld [vmem:[%s371 + $0x1d8] sm:$0xff]
        %v1411 = vld [vmem:[%s371 + $0x1e0] sm:$0xff]
        %v1412 = vld [vmem:[%s371 + $0x1e8] sm:$0xff]
        %v1413 = vld [vmem:[%s371 + $0x1f0] sm:$0xff]
        %v1414 = vld [vmem:[%s371 + $0x1f8] sm:$0xff]
        %v1415 = vld [vmem:[%s3] sm:$0xff]
        %v1416 = vld [vmem:[%s3 + $0x8] sm:$0xff]
        %v1417 = vld [vmem:[%s3 + $0x10] sm:$0xff]
        %v1418 = vld [vmem:[%s3 + $0x18] sm:$0xff]
        %v1419 = vld [vmem:[%s3 + $0x20] sm:$0xff]
        %v1420 = vld [vmem:[%s3 + $0x28] sm:$0xff]
        %v1421 = vld [vmem:[%s3 + $0x30] sm:$0xff]
        %v1422 = vld [vmem:[%s3 + $0x38] sm:$0xff]
        %v1423 = vld [vmem:[%s3 + $0x40] sm:$0xff]
        %v1424 = vld [vmem:[%s3 + $0x48] sm:$0xff]
        %v1425 = vld [vmem:[%s3 + $0x50] sm:$0xff]
        %v1426 = vld [vmem:[%s3 + $0x58] sm:$0xff]
        %v1427 = vld [vmem:[%s3 + $0x60] sm:$0xff]
        %v1428 = vld [vmem:[%s3 + $0x68] sm:$0xff]
        %v1429 = vld [vmem:[%s3 + $0x70] sm:$0xff]
        %v1430 = vld [vmem:[%s3 + $0x78] sm:$0xff]
        %v1431 = vld [vmem:[%s4] sm:$0xff]
        %v1432 = vld [vmem:[%s4 + $0x8] sm:$0xff]
        %v1433 = vld [vmem:[%s4 + $0x10] sm:$0xff]
        %v1434 = vld [vmem:[%s4 + $0x18] sm:$0xff]
        %v1435 = vld [vmem:[%s4 + $0x20] sm:$0xff]
        %v1436 = vld [vmem:[%s4 + $0x28] sm:$0xff]
        %v1437 = vld [vmem:[%s4 + $0x30] sm:$0xff]
        %v1438 = vld [vmem:[%s4 + $0x38] sm:$0xff]
        %v1439 = vld [vmem:[%s4 + $0x40] sm:$0xff]
        %v1440 = vld [vmem:[%s4 + $0x48] sm:$0xff]
        %v1441 = vld [vmem:[%s4 + $0x50] sm:$0xff]
        %v1442 = vld [vmem:[%s4 + $0x58] sm:$0xff]
        %v1443 = vld [vmem:[%s4 + $0x60] sm:$0xff]
        %v1444 = vld [vmem:[%s4 + $0x68] sm:$0xff]
        %v1445 = vld [vmem:[%s4 + $0x70] sm:$0xff]
        %v1446 = vld [vmem:[%s4 + $0x78] sm:$0xff]
        %1447 = vmatprep.subr.mxu0 0.0
        %1448 = vmatpush1.msra.mxu0 %v1446
        %1449 = vmatprep.subr.mxu0 0.0
        %1450 = vmatpush1.msra.mxu0 %v1445
        %1451 = vmatprep.subr.mxu0 0.0
        %1452 = vmatpush1.msra.mxu0 %v1444
        %1453 = vmatprep.subr.mxu0 0.0
        %1454 = vmatpush1.msra.mxu0 %v1443
        %1455 = vmatprep.subr.mxu0 0.0
        %1456 = vmatpush1.msra.mxu0 %v1442
        %1457 = vmatprep.subr.mxu0 0.0
        %1458 = vmatpush1.msra.mxu0 %v1441
        %1459 = vmatprep.subr.mxu0 0.0
        %1460 = vmatpush1.msra.mxu0 %v1440
        %1461 = vmatprep.subr.mxu0 0.0
        %1462 = vmatpush1.msra.mxu0 %v1439
        %1463 = vmatprep.subr.mxu0 0.0
        %1464 = vmatpush1.msra.mxu0 %v1438
        %1465 = vmatprep.subr.mxu0 0.0
        %1466 = vmatpush1.msra.mxu0 %v1437
        %1467 = vmatprep.subr.mxu0 0.0
        %1468 = vmatpush1.msra.mxu0 %v1436
        %1469 = vmatprep.subr.mxu0 0.0
        %1470 = vmatpush1.msra.mxu0 %v1435
        %1471 = vmatprep.subr.mxu0 0.0
        %1472 = vmatpush1.msra.mxu0 %v1434
        %1473 = vmatprep.subr.mxu0 0.0
        %1474 = vmatpush1.msra.mxu0 %v1433
        %1475 = vmatprep.subr.mxu0 0.0
        %1476 = vmatpush1.msra.mxu0 %v1432
        %1477 = vmatprep.subr.mxu0 0.0
        %1478 = vmatpush1.msra.mxu0 %v1431
        %1479 = vmatprep.subr.mxu0 0.0
        %1480 = vmatpush2.msra.mxu0 0.0
        %1481 = vmatprep.subr.mxu0 0.0
        %1482 = vmatpush2.msra.mxu0 0.0
        %1483 = vmatprep.subr.mxu0 0.0
        %1484 = vmatpush2.msra.mxu0 0.0
        %1485 = vmatprep.subr.mxu0 0.0
        %1486 = vmatpush2.msra.mxu0 0.0
        %1487 = vmatprep.subr.mxu0 0.0
        %1488 = vmatpush2.msra.mxu0 0.0
        %1489 = vmatprep.subr.mxu0 0.0
        %1490 = vmatpush2.msra.mxu0 0.0
        %1491 = vmatprep.subr.mxu0 0.0
        %1492 = vmatpush2.msra.mxu0 0.0
        %1493 = vmatprep.subr.mxu0 0.0
        %1494 = vmatpush2.msra.mxu0 0.0
        %1495 = vmatprep.subr.mxu0 0.0
        %1496 = vmatpush2.msra.mxu0 0.0
        %1497 = vmatprep.subr.mxu0 0.0
        %1498 = vmatpush2.msra.mxu0 0.0
        %1499 = vmatprep.subr.mxu0 0.0
        %1500 = vmatpush2.msra.mxu0 0.0
        %1501 = vmatprep.subr.mxu0 0.0
        %1502 = vmatpush2.msra.mxu0 0.0
        %1503 = vmatprep.subr.mxu0 0.0
        %1504 = vmatpush2.msra.mxu0 0.0
        %1505 = vmatprep.subr.mxu0 0.0
        %1506 = vmatpush2.msra.mxu0 0.0
        %1507 = vmatprep.subr.mxu0 0.0
        %1508 = vmatpush2.msra.mxu0 0.0
        %1509 = vmatprep.subr.mxu0 0.0
        %1510 = vmatpush2.msra.mxu0 0.0
        %1511 = vmatprep.mubr.f32.mxu0 0.0
        %1512 = vmatmul.mubr.f32.gmra.mxu0 %v1351
        %v1513 = vpop.f32.mrf.mxu0
        %v1514 = vadd.f32 0.0, %v1513
        %v1515 = vpop.f32.mrf.mxu0
        %1516 = vmatprep.mubr.f32.mxu0 0.0
        %1517 = vmatmul.mubr.f32.gmra.mxu0 %v1352
        %v1518 = vpop.f32.mrf.mxu0
        %v1519 = vadd.f32 0.0, %v1518
        %v1520 = vpop.f32.mrf.mxu0
        %1521 = vmatprep.mubr.f32.mxu0 0.0
        %1522 = vmatmul.mubr.f32.gmra.mxu0 %v1353
        %v1523 = vpop.f32.mrf.mxu0
        %v1524 = vadd.f32 0.0, %v1523
        %v1525 = vpop.f32.mrf.mxu0
        %1526 = vmatprep.mubr.f32.mxu0 0.0
        %1527 = vmatmul.mubr.f32.gmra.mxu0 %v1354
        %v1528 = vpop.f32.mrf.mxu0
        %v1529 = vadd.f32 0.0, %v1528
        %v1530 = vpop.f32.mrf.mxu0
        %1531 = vmatprep.mubr.f32.mxu0 0.0
        %1532 = vmatmul.mubr.f32.gmra.mxu0 %v1355
        %v1533 = vpop.f32.mrf.mxu0
        %v1534 = vadd.f32 0.0, %v1533
        %v1535 = vpop.f32.mrf.mxu0
        %1536 = vmatprep.mubr.f32.mxu0 0.0
        %1537 = vmatmul.mubr.f32.gmra.mxu0 %v1356
        %v1538 = vpop.f32.mrf.mxu0
        %v1539 = vadd.f32 0.0, %v1538
        %v1540 = vpop.f32.mrf.mxu0
        %1541 = vmatprep.mubr.f32.mxu0 0.0
        %1542 = vmatmul.mubr.f32.gmra.mxu0 %v1357
        %v1543 = vpop.f32.mrf.mxu0
        %v1544 = vadd.f32 0.0, %v1543
        %v1545 = vpop.f32.mrf.mxu0
        %1546 = vmatprep.mubr.f32.mxu0 0.0
        %1547 = vmatmul.mubr.f32.gmra.mxu0 %v1358
        %v1548 = vpop.f32.mrf.mxu0
        %v1549 = vadd.f32 0.0, %v1548
        %v1550 = vpop.f32.mrf.mxu0
        %1551 = vmatprep.mubr.f32.mxu0 0.0
        %1552 = vmatmul.mubr.f32.gmra.mxu0 %v1359
        %v1553 = vpop.f32.mrf.mxu0
        %v1554 = vadd.f32 0.0, %v1553
        %v1555 = vpop.f32.mrf.mxu0
        %1556 = vmatprep.mubr.f32.mxu0 0.0
        %1557 = vmatmul.mubr.f32.gmra.mxu0 %v1360
        %v1558 = vpop.f32.mrf.mxu0
        %v1559 = vadd.f32 0.0, %v1558
        %v1560 = vpop.f32.mrf.mxu0
        %1561 = vmatprep.mubr.f32.mxu0 0.0
        %1562 = vmatmul.mubr.f32.gmra.mxu0 %v1361
        %v1563 = vpop.f32.mrf.mxu0
        %v1564 = vadd.f32 0.0, %v1563
        %v1565 = vpop.f32.mrf.mxu0
        %1566 = vmatprep.mubr.f32.mxu0 0.0
        %1567 = vmatmul.mubr.f32.gmra.mxu0 %v1362
        %v1568 = vpop.f32.mrf.mxu0
        %v1569 = vadd.f32 0.0, %v1568
        %v1570 = vpop.f32.mrf.mxu0
        %1571 = vmatprep.mubr.f32.mxu0 0.0
        %1572 = vmatmul.mubr.f32.gmra.mxu0 %v1363
        %v1573 = vpop.f32.mrf.mxu0
        %v1574 = vadd.f32 0.0, %v1573
        %v1575 = vpop.f32.mrf.mxu0
        %1576 = vmatprep.mubr.f32.mxu0 0.0
        %1577 = vmatmul.mubr.f32.gmra.mxu0 %v1364
        %v1578 = vpop.f32.mrf.mxu0
        %v1579 = vadd.f32 0.0, %v1578
        %v1580 = vpop.f32.mrf.mxu0
        %1581 = vmatprep.mubr.f32.mxu0 0.0
        %1582 = vmatmul.mubr.f32.gmra.mxu0 %v1365
        %v1583 = vpop.f32.mrf.mxu0
        %v1584 = vadd.f32 0.0, %v1583
        %v1585 = vpop.f32.mrf.mxu0
        %1586 = vmatprep.mubr.f32.mxu0 0.0
        %1587 = vmatmul.mubr.f32.gmra.mxu0 %v1366
        %v1588 = vpop.f32.mrf.mxu0
        %v1589 = vadd.f32 0.0, %v1588
        %v1590 = vpop.f32.mrf.mxu0
        %1591 = vmatprep.mubr.f32.mxu0 0.0
        %1592 = vmatmul.mubr.f32.gmra.mxu0 %v1367
        %v1593 = vpop.f32.mrf.mxu0
        %v1594 = vadd.f32 0.0, %v1593
        %v1595 = vpop.f32.mrf.mxu0
        %1596 = vmatprep.mubr.f32.mxu0 0.0
        %1597 = vmatmul.mubr.f32.gmra.mxu0 %v1368
        %v1598 = vpop.f32.mrf.mxu0
        %v1599 = vadd.f32 0.0, %v1598
        %v1600 = vpop.f32.mrf.mxu0
        %1601 = vmatprep.mubr.f32.mxu0 0.0
        %1602 = vmatmul.mubr.f32.gmra.mxu0 %v1369
        %v1603 = vpop.f32.mrf.mxu0
        %v1604 = vadd.f32 0.0, %v1603
        %v1605 = vpop.f32.mrf.mxu0
        %1606 = vmatprep.mubr.f32.mxu0 0.0
        %1607 = vmatmul.mubr.f32.gmra.mxu0 %v1370
        %v1608 = vpop.f32.mrf.mxu0
        %v1609 = vadd.f32 0.0, %v1608
        %v1610 = vpop.f32.mrf.mxu0
        %1611 = vmatprep.mubr.f32.mxu0 0.0
        %1612 = vmatmul.mubr.f32.gmra.mxu0 %v1371
        %v1613 = vpop.f32.mrf.mxu0
        %v1614 = vadd.f32 0.0, %v1613
        %v1615 = vpop.f32.mrf.mxu0
        %1616 = vmatprep.mubr.f32.mxu0 0.0
        %1617 = vmatmul.mubr.f32.gmra.mxu0 %v1372
        %v1618 = vpop.f32.mrf.mxu0
        %v1619 = vadd.f32 0.0, %v1618
        %v1620 = vpop.f32.mrf.mxu0
        %1621 = vmatprep.mubr.f32.mxu0 0.0
        %1622 = vmatmul.mubr.f32.gmra.mxu0 %v1373
        %v1623 = vpop.f32.mrf.mxu0
        %v1624 = vadd.f32 0.0, %v1623
        %v1625 = vpop.f32.mrf.mxu0
        %1626 = vmatprep.mubr.f32.mxu0 0.0
        %1627 = vmatmul.mubr.f32.gmra.mxu0 %v1374
        %v1628 = vpop.f32.mrf.mxu0
        %v1629 = vadd.f32 0.0, %v1628
        %v1630 = vpop.f32.mrf.mxu0
        %1631 = vmatprep.mubr.f32.mxu0 0.0
        %1632 = vmatmul.mubr.f32.gmra.mxu0 %v1375
        %v1633 = vpop.f32.mrf.mxu0
        %v1634 = vadd.f32 0.0, %v1633
        %v1635 = vpop.f32.mrf.mxu0
        %1636 = vmatprep.mubr.f32.mxu0 0.0
        %1637 = vmatmul.mubr.f32.gmra.mxu0 %v1376
        %v1638 = vpop.f32.mrf.mxu0
        %v1639 = vadd.f32 0.0, %v1638
        %v1640 = vpop.f32.mrf.mxu0
        %1641 = vmatprep.mubr.f32.mxu0 0.0
        %1642 = vmatmul.mubr.f32.gmra.mxu0 %v1377
        %v1643 = vpop.f32.mrf.mxu0
        %v1644 = vadd.f32 0.0, %v1643
        %v1645 = vpop.f32.mrf.mxu0
        %1646 = vmatprep.mubr.f32.mxu0 0.0
        %1647 = vmatmul.mubr.f32.gmra.mxu0 %v1378
        %v1648 = vpop.f32.mrf.mxu0
        %v1649 = vadd.f32 0.0, %v1648
        %v1650 = vpop.f32.mrf.mxu0
        %1651 = vmatprep.mubr.f32.mxu0 0.0
        %1652 = vmatmul.mubr.f32.gmra.mxu0 %v1379
        %v1653 = vpop.f32.mrf.mxu0
        %v1654 = vadd.f32 0.0, %v1653
        %v1655 = vpop.f32.mrf.mxu0
        %1656 = vmatprep.mubr.f32.mxu0 0.0
        %1657 = vmatmul.mubr.f32.gmra.mxu0 %v1380
        %v1658 = vpop.f32.mrf.mxu0
        %v1659 = vadd.f32 0.0, %v1658
        %v1660 = vpop.f32.mrf.mxu0
        %1661 = vmatprep.mubr.f32.mxu0 0.0
        %1662 = vmatmul.mubr.f32.gmra.mxu0 %v1381
        %v1663 = vpop.f32.mrf.mxu0
        %v1664 = vadd.f32 0.0, %v1663
        %v1665 = vpop.f32.mrf.mxu0
        %1666 = vmatprep.mubr.f32.mxu0 0.0
        %1667 = vmatmul.mubr.f32.gmra.mxu0 %v1382
        %v1668 = vpop.f32.mrf.mxu0
        %v1669 = vadd.f32 0.0, %v1668
        %v1670 = vpop.f32.mrf.mxu0
        %1671 = vmatprep.mubr.f32.mxu0 0.0
        %1672 = vmatmul.mubr.f32.gmra.mxu0 %v1383
        %v1673 = vpop.f32.mrf.mxu0
        %v1674 = vadd.f32 0.0, %v1673
        %v1675 = vpop.f32.mrf.mxu0
        %1676 = vmatprep.mubr.f32.mxu0 0.0
        %1677 = vmatmul.mubr.f32.gmra.mxu0 %v1384
        %v1678 = vpop.f32.mrf.mxu0
        %v1679 = vadd.f32 0.0, %v1678
        %v1680 = vpop.f32.mrf.mxu0
        %1681 = vmatprep.mubr.f32.mxu0 0.0
        %1682 = vmatmul.mubr.f32.gmra.mxu0 %v1385
        %v1683 = vpop.f32.mrf.mxu0
        %v1684 = vadd.f32 0.0, %v1683
        %v1685 = vpop.f32.mrf.mxu0
        %1686 = vmatprep.mubr.f32.mxu0 0.0
        %1687 = vmatmul.mubr.f32.gmra.mxu0 %v1386
        %v1688 = vpop.f32.mrf.mxu0
        %v1689 = vadd.f32 0.0, %v1688
        %v1690 = vpop.f32.mrf.mxu0
        %1691 = vmatprep.mubr.f32.mxu0 0.0
        %1692 = vmatmul.mubr.f32.gmra.mxu0 %v1387
        %v1693 = vpop.f32.mrf.mxu0
        %v1694 = vadd.f32 0.0, %v1693
        %v1695 = vpop.f32.mrf.mxu0
        %1696 = vmatprep.mubr.f32.mxu0 0.0
        %1697 = vmatmul.mubr.f32.gmra.mxu0 %v1388
        %v1698 = vpop.f32.mrf.mxu0
        %v1699 = vadd.f32 0.0, %v1698
        %v1700 = vpop.f32.mrf.mxu0
        %1701 = vmatprep.mubr.f32.mxu0 0.0
        %1702 = vmatmul.mubr.f32.gmra.mxu0 %v1389
        %v1703 = vpop.f32.mrf.mxu0
        %v1704 = vadd.f32 0.0, %v1703
        %v1705 = vpop.f32.mrf.mxu0
        %1706 = vmatprep.mubr.f32.mxu0 0.0
        %1707 = vmatmul.mubr.f32.gmra.mxu0 %v1390
        %v1708 = vpop.f32.mrf.mxu0
        %v1709 = vadd.f32 0.0, %v1708
        %v1710 = vpop.f32.mrf.mxu0
        %1711 = vmatprep.mubr.f32.mxu0 0.0
        %1712 = vmatmul.mubr.f32.gmra.mxu0 %v1391
        %v1713 = vpop.f32.mrf.mxu0
        %v1714 = vadd.f32 0.0, %v1713
        %v1715 = vpop.f32.mrf.mxu0
        %1716 = vmatprep.mubr.f32.mxu0 0.0
        %1717 = vmatmul.mubr.f32.gmra.mxu0 %v1392
        %v1718 = vpop.f32.mrf.mxu0
        %v1719 = vadd.f32 0.0, %v1718
        %v1720 = vpop.f32.mrf.mxu0
        %1721 = vmatprep.mubr.f32.mxu0 0.0
        %1722 = vmatmul.mubr.f32.gmra.mxu0 %v1393
        %v1723 = vpop.f32.mrf.mxu0
        %v1724 = vadd.f32 0.0, %v1723
        %v1725 = vpop.f32.mrf.mxu0
        %1726 = vmatprep.mubr.f32.mxu0 0.0
        %1727 = vmatmul.mubr.f32.gmra.mxu0 %v1394
        %v1728 = vpop.f32.mrf.mxu0
        %v1729 = vadd.f32 0.0, %v1728
        %v1730 = vpop.f32.mrf.mxu0
        %1731 = vmatprep.mubr.f32.mxu0 0.0
        %1732 = vmatmul.mubr.f32.gmra.mxu0 %v1395
        %v1733 = vpop.f32.mrf.mxu0
        %v1734 = vadd.f32 0.0, %v1733
        %v1735 = vpop.f32.mrf.mxu0
        %1736 = vmatprep.mubr.f32.mxu0 0.0
        %1737 = vmatmul.mubr.f32.gmra.mxu0 %v1396
        %v1738 = vpop.f32.mrf.mxu0
        %v1739 = vadd.f32 0.0, %v1738
        %v1740 = vpop.f32.mrf.mxu0
        %1741 = vmatprep.mubr.f32.mxu0 0.0
        %1742 = vmatmul.mubr.f32.gmra.mxu0 %v1397
        %v1743 = vpop.f32.mrf.mxu0
        %v1744 = vadd.f32 0.0, %v1743
        %v1745 = vpop.f32.mrf.mxu0
        %1746 = vmatprep.mubr.f32.mxu0 0.0
        %1747 = vmatmul.mubr.f32.gmra.mxu0 %v1398
        %v1748 = vpop.f32.mrf.mxu0
        %v1749 = vadd.f32 0.0, %v1748
        %v1750 = vpop.f32.mrf.mxu0
        %1751 = vmatprep.mubr.f32.mxu0 0.0
        %1752 = vmatmul.mubr.f32.gmra.mxu0 %v1399
        %v1753 = vpop.f32.mrf.mxu0
        %v1754 = vadd.f32 0.0, %v1753
        %v1755 = vpop.f32.mrf.mxu0
        %1756 = vmatprep.mubr.f32.mxu0 0.0
        %1757 = vmatmul.mubr.f32.gmra.mxu0 %v1400
        %v1758 = vpop.f32.mrf.mxu0
        %v1759 = vadd.f32 0.0, %v1758
        %v1760 = vpop.f32.mrf.mxu0
        %1761 = vmatprep.mubr.f32.mxu0 0.0
        %1762 = vmatmul.mubr.f32.gmra.mxu0 %v1401
        %v1763 = vpop.f32.mrf.mxu0
        %v1764 = vadd.f32 0.0, %v1763
        %v1765 = vpop.f32.mrf.mxu0
        %1766 = vmatprep.mubr.f32.mxu0 0.0
        %1767 = vmatmul.mubr.f32.gmra.mxu0 %v1402
        %v1768 = vpop.f32.mrf.mxu0
        %v1769 = vadd.f32 0.0, %v1768
        %v1770 = vpop.f32.mrf.mxu0
        %1771 = vmatprep.mubr.f32.mxu0 0.0
        %1772 = vmatmul.mubr.f32.gmra.mxu0 %v1403
        %v1773 = vpop.f32.mrf.mxu0
        %v1774 = vadd.f32 0.0, %v1773
        %v1775 = vpop.f32.mrf.mxu0
        %1776 = vmatprep.mubr.f32.mxu0 0.0
        %1777 = vmatmul.mubr.f32.gmra.mxu0 %v1404
        %v1778 = vpop.f32.mrf.mxu0
        %v1779 = vadd.f32 0.0, %v1778
        %v1780 = vpop.f32.mrf.mxu0
        %1781 = vmatprep.mubr.f32.mxu0 0.0
        %1782 = vmatmul.mubr.f32.gmra.mxu0 %v1405
        %v1783 = vpop.f32.mrf.mxu0
        %v1784 = vadd.f32 0.0, %v1783
        %v1785 = vpop.f32.mrf.mxu0
        %1786 = vmatprep.mubr.f32.mxu0 0.0
        %1787 = vmatmul.mubr.f32.gmra.mxu0 %v1406
        %v1788 = vpop.f32.mrf.mxu0
        %v1789 = vadd.f32 0.0, %v1788
        %v1790 = vpop.f32.mrf.mxu0
        %1791 = vmatprep.mubr.f32.mxu0 0.0
        %1792 = vmatmul.mubr.f32.gmra.mxu0 %v1407
        %v1793 = vpop.f32.mrf.mxu0
        %v1794 = vadd.f32 0.0, %v1793
        %v1795 = vpop.f32.mrf.mxu0
        %1796 = vmatprep.mubr.f32.mxu0 0.0
        %1797 = vmatmul.mubr.f32.gmra.mxu0 %v1408
        %v1798 = vpop.f32.mrf.mxu0
        %v1799 = vadd.f32 0.0, %v1798
        %v1800 = vpop.f32.mrf.mxu0
        %1801 = vmatprep.mubr.f32.mxu0 0.0
        %1802 = vmatmul.mubr.f32.gmra.mxu0 %v1409
        %v1803 = vpop.f32.mrf.mxu0
        %v1804 = vadd.f32 0.0, %v1803
        %v1805 = vpop.f32.mrf.mxu0
        %1806 = vmatprep.mubr.f32.mxu0 0.0
        %1807 = vmatmul.mubr.f32.gmra.mxu0 %v1410
        %v1808 = vpop.f32.mrf.mxu0
        %v1809 = vadd.f32 0.0, %v1808
        %v1810 = vpop.f32.mrf.mxu0
        %1811 = vmatprep.mubr.f32.mxu0 0.0
        %1812 = vmatmul.mubr.f32.gmra.mxu0 %v1411
        %v1813 = vpop.f32.mrf.mxu0
        %v1814 = vadd.f32 0.0, %v1813
        %v1815 = vpop.f32.mrf.mxu0
        %1816 = vmatprep.mubr.f32.mxu0 0.0
        %1817 = vmatmul.mubr.f32.gmra.mxu0 %v1412
        %v1818 = vpop.f32.mrf.mxu0
        %v1819 = vadd.f32 0.0, %v1818
        %v1820 = vpop.f32.mrf.mxu0
        %1821 = vmatprep.mubr.f32.mxu0 0.0
        %1822 = vmatmul.mubr.f32.gmra.mxu0 %v1413
        %v1823 = vpop.f32.mrf.mxu0
        %v1824 = vadd.f32 0.0, %v1823
        %v1825 = vpop.f32.mrf.mxu0
        %1826 = vmatprep.mubr.f32.mxu0 0.0
        %1827 = vmatmul.mubr.f32.gmra.mxu0 %v1414
        %v1828 = vpop.f32.mrf.mxu0
        %v1829 = vadd.f32 0.0, %v1828
        %v1830 = vpop.f32.mrf.mxu0
        %1831 = vdwg.mxu0
        %1832 = vmatprep.subr.mxu0 0.0
        %1833 = vmatpush1.msra.mxu0 %v1430
        %1834 = vmatprep.subr.mxu0 0.0
        %1835 = vmatpush1.msra.mxu0 %v1429
        %1836 = vmatprep.subr.mxu0 0.0
        %1837 = vmatpush1.msra.mxu0 %v1428
        %1838 = vmatprep.subr.mxu0 0.0
        %1839 = vmatpush1.msra.mxu0 %v1427
        %1840 = vmatprep.subr.mxu0 0.0
        %1841 = vmatpush1.msra.mxu0 %v1426
        %1842 = vmatprep.subr.mxu0 0.0
        %1843 = vmatpush1.msra.mxu0 %v1425
        %1844 = vmatprep.subr.mxu0 0.0
        %1845 = vmatpush1.msra.mxu0 %v1424
        %1846 = vmatprep.subr.mxu0 0.0
        %1847 = vmatpush1.msra.mxu0 %v1423
        %1848 = vmatprep.subr.mxu0 0.0
        %1849 = vmatpush1.msra.mxu0 %v1422
        %1850 = vmatprep.subr.mxu0 0.0
        %1851 = vmatpush1.msra.mxu0 %v1421
        %1852 = vmatprep.subr.mxu0 0.0
        %1853 = vmatpush1.msra.mxu0 %v1420
        %1854 = vmatprep.subr.mxu0 0.0
        %1855 = vmatpush1.msra.mxu0 %v1419
        %1856 = vmatprep.subr.mxu0 0.0
        %1857 = vmatpush1.msra.mxu0 %v1418
        %1858 = vmatprep.subr.mxu0 0.0
        %1859 = vmatpush1.msra.mxu0 %v1417
        %1860 = vmatprep.subr.mxu0 0.0
        %1861 = vmatpush1.msra.mxu0 %v1416
        %1862 = vmatprep.subr.mxu0 0.0
        %1863 = vmatpush1.msra.mxu0 %v1415
        %1864 = vmatprep.subr.mxu0 0.0
        %1865 = vmatpush2.msra.mxu0 0.0
        %1866 = vmatprep.subr.mxu0 0.0
        %1867 = vmatpush2.msra.mxu0 0.0
        %1868 = vmatprep.subr.mxu0 0.0
        %1869 = vmatpush2.msra.mxu0 0.0
        %1870 = vmatprep.subr.mxu0 0.0
        %1871 = vmatpush2.msra.mxu0 0.0
        %1872 = vmatprep.subr.mxu0 0.0
        %1873 = vmatpush2.msra.mxu0 0.0
        %1874 = vmatprep.subr.mxu0 0.0
        %1875 = vmatpush2.msra.mxu0 0.0
        %1876 = vmatprep.subr.mxu0 0.0
        %1877 = vmatpush2.msra.mxu0 0.0
        %1878 = vmatprep.subr.mxu0 0.0
        %1879 = vmatpush2.msra.mxu0 0.0
        %1880 = vmatprep.subr.mxu0 0.0
        %1881 = vmatpush2.msra.mxu0 0.0
        %1882 = vmatprep.subr.mxu0 0.0
        %1883 = vmatpush2.msra.mxu0 0.0
        %1884 = vmatprep.subr.mxu0 0.0
        %1885 = vmatpush2.msra.mxu0 0.0
        %1886 = vmatprep.subr.mxu0 0.0
        %1887 = vmatpush2.msra.mxu0 0.0
        %1888 = vmatprep.subr.mxu0 0.0
        %1889 = vmatpush2.msra.mxu0 0.0
        %1890 = vmatprep.subr.mxu0 0.0
        %1891 = vmatpush2.msra.mxu0 0.0
        %1892 = vmatprep.subr.mxu0 0.0
        %1893 = vmatpush2.msra.mxu0 0.0
        %1894 = vmatprep.subr.mxu0 0.0
        %1895 = vmatpush2.msra.mxu0 0.0
        %1896 = vmatprep.mubr.f32.mxu0 0.0
        %1897 = vmatmul.mubr.f32.gmra.mxu0 %v713
        %v1898 = vpop.f32.mrf.mxu0
        %v1899 = vadd.f32 %v1514, %v1898
        %v1900 = vpop.f32.mrf.mxu0
        %1901 = vmatprep.mubr.f32.mxu0 0.0
        %1902 = vmatmul.mubr.f32.gmra.mxu0 %v718
        %v1903 = vpop.f32.mrf.mxu0
        %v1904 = vadd.f32 %v1519, %v1903
        %v1905 = vpop.f32.mrf.mxu0
        %1906 = vmatprep.mubr.f32.mxu0 0.0
        %1907 = vmatmul.mubr.f32.gmra.mxu0 %v723
        %v1908 = vpop.f32.mrf.mxu0
        %v1909 = vadd.f32 %v1524, %v1908
        %v1910 = vpop.f32.mrf.mxu0
        %1911 = vmatprep.mubr.f32.mxu0 0.0
        %1912 = vmatmul.mubr.f32.gmra.mxu0 %v728
        %v1913 = vpop.f32.mrf.mxu0
        %v1914 = vadd.f32 %v1529, %v1913
        %v1915 = vpop.f32.mrf.mxu0
        %1916 = vmatprep.mubr.f32.mxu0 0.0
        %1917 = vmatmul.mubr.f32.gmra.mxu0 %v733
        %v1918 = vpop.f32.mrf.mxu0
        %v1919 = vadd.f32 %v1534, %v1918
        %v1920 = vpop.f32.mrf.mxu0
        %1921 = vmatprep.mubr.f32.mxu0 0.0
        %1922 = vmatmul.mubr.f32.gmra.mxu0 %v738
        %v1923 = vpop.f32.mrf.mxu0
        %v1924 = vadd.f32 %v1539, %v1923
        %v1925 = vpop.f32.mrf.mxu0
        %1926 = vmatprep.mubr.f32.mxu0 0.0
        %1927 = vmatmul.mubr.f32.gmra.mxu0 %v743
        %v1928 = vpop.f32.mrf.mxu0
        %v1929 = vadd.f32 %v1544, %v1928
        %v1930 = vpop.f32.mrf.mxu0
        %1931 = vmatprep.mubr.f32.mxu0 0.0
        %1932 = vmatmul.mubr.f32.gmra.mxu0 %v748
        %v1933 = vpop.f32.mrf.mxu0
        %v1934 = vadd.f32 %v1549, %v1933
        %v1935 = vpop.f32.mrf.mxu0
        %1936 = vmatprep.mubr.f32.mxu0 0.0
        %1937 = vmatmul.mubr.f32.gmra.mxu0 %v753
        %v1938 = vpop.f32.mrf.mxu0
        %v1939 = vadd.f32 %v1554, %v1938
        %v1940 = vpop.f32.mrf.mxu0
        %1941 = vmatprep.mubr.f32.mxu0 0.0
        %1942 = vmatmul.mubr.f32.gmra.mxu0 %v758
        %v1943 = vpop.f32.mrf.mxu0
        %v1944 = vadd.f32 %v1559, %v1943
        %v1945 = vpop.f32.mrf.mxu0
        %1946 = vmatprep.mubr.f32.mxu0 0.0
        %1947 = vmatmul.mubr.f32.gmra.mxu0 %v763
        %v1948 = vpop.f32.mrf.mxu0
        %v1949 = vadd.f32 %v1564, %v1948
        %v1950 = vpop.f32.mrf.mxu0
        %1951 = vmatprep.mubr.f32.mxu0 0.0
        %1952 = vmatmul.mubr.f32.gmra.mxu0 %v768
        %v1953 = vpop.f32.mrf.mxu0
        %v1954 = vadd.f32 %v1569, %v1953
        %v1955 = vpop.f32.mrf.mxu0
        %1956 = vmatprep.mubr.f32.mxu0 0.0
        %1957 = vmatmul.mubr.f32.gmra.mxu0 %v773
        %v1958 = vpop.f32.mrf.mxu0
        %v1959 = vadd.f32 %v1574, %v1958
        %v1960 = vpop.f32.mrf.mxu0
        %1961 = vmatprep.mubr.f32.mxu0 0.0
        %1962 = vmatmul.mubr.f32.gmra.mxu0 %v778
        %v1963 = vpop.f32.mrf.mxu0
        %v1964 = vadd.f32 %v1579, %v1963
        %v1965 = vpop.f32.mrf.mxu0
        %1966 = vmatprep.mubr.f32.mxu0 0.0
        %1967 = vmatmul.mubr.f32.gmra.mxu0 %v783
        %v1968 = vpop.f32.mrf.mxu0
        %v1969 = vadd.f32 %v1584, %v1968
        %v1970 = vpop.f32.mrf.mxu0
        %1971 = vmatprep.mubr.f32.mxu0 0.0
        %1972 = vmatmul.mubr.f32.gmra.mxu0 %v788
        %v1973 = vpop.f32.mrf.mxu0
        %v1974 = vadd.f32 %v1589, %v1973
        %v1975 = vpop.f32.mrf.mxu0
        %1976 = vmatprep.mubr.f32.mxu0 0.0
        %1977 = vmatmul.mubr.f32.gmra.mxu0 %v793
        %v1978 = vpop.f32.mrf.mxu0
        %v1979 = vadd.f32 %v1594, %v1978
        %v1980 = vpop.f32.mrf.mxu0
        %1981 = vmatprep.mubr.f32.mxu0 0.0
        %1982 = vmatmul.mubr.f32.gmra.mxu0 %v798
        %v1983 = vpop.f32.mrf.mxu0
        %v1984 = vadd.f32 %v1599, %v1983
        %v1985 = vpop.f32.mrf.mxu0
        %1986 = vmatprep.mubr.f32.mxu0 0.0
        %1987 = vmatmul.mubr.f32.gmra.mxu0 %v803
        %v1988 = vpop.f32.mrf.mxu0
        %v1989 = vadd.f32 %v1604, %v1988
        %v1990 = vpop.f32.mrf.mxu0
        %1991 = vmatprep.mubr.f32.mxu0 0.0
        %1992 = vmatmul.mubr.f32.gmra.mxu0 %v808
        %v1993 = vpop.f32.mrf.mxu0
        %v1994 = vadd.f32 %v1609, %v1993
        %v1995 = vpop.f32.mrf.mxu0
        %1996 = vmatprep.mubr.f32.mxu0 0.0
        %1997 = vmatmul.mubr.f32.gmra.mxu0 %v813
        %v1998 = vpop.f32.mrf.mxu0
        %v1999 = vadd.f32 %v1614, %v1998
        %v2000 = vpop.f32.mrf.mxu0
        %2001 = vmatprep.mubr.f32.mxu0 0.0
        %2002 = vmatmul.mubr.f32.gmra.mxu0 %v818
        %v2003 = vpop.f32.mrf.mxu0
        %v2004 = vadd.f32 %v1619, %v2003
        %v2005 = vpop.f32.mrf.mxu0
        %2006 = vmatprep.mubr.f32.mxu0 0.0
        %2007 = vmatmul.mubr.f32.gmra.mxu0 %v823
        %v2008 = vpop.f32.mrf.mxu0
        %v2009 = vadd.f32 %v1624, %v2008
        %v2010 = vpop.f32.mrf.mxu0
        %2011 = vmatprep.mubr.f32.mxu0 0.0
        %2012 = vmatmul.mubr.f32.gmra.mxu0 %v828
        %v2013 = vpop.f32.mrf.mxu0
        %v2014 = vadd.f32 %v1629, %v2013
        %v2015 = vpop.f32.mrf.mxu0
        %2016 = vmatprep.mubr.f32.mxu0 0.0
        %2017 = vmatmul.mubr.f32.gmra.mxu0 %v833
        %v2018 = vpop.f32.mrf.mxu0
        %v2019 = vadd.f32 %v1634, %v2018
        %v2020 = vpop.f32.mrf.mxu0
        %2021 = vmatprep.mubr.f32.mxu0 0.0
        %2022 = vmatmul.mubr.f32.gmra.mxu0 %v838
        %v2023 = vpop.f32.mrf.mxu0
        %v2024 = vadd.f32 %v1639, %v2023
        %v2025 = vpop.f32.mrf.mxu0
        %2026 = vmatprep.mubr.f32.mxu0 0.0
        %2027 = vmatmul.mubr.f32.gmra.mxu0 %v843
        %v2028 = vpop.f32.mrf.mxu0
        %v2029 = vadd.f32 %v1644, %v2028
        %v2030 = vpop.f32.mrf.mxu0
        %2031 = vmatprep.mubr.f32.mxu0 0.0
        %2032 = vmatmul.mubr.f32.gmra.mxu0 %v848
        %v2033 = vpop.f32.mrf.mxu0
        %v2034 = vadd.f32 %v1649, %v2033
        %v2035 = vpop.f32.mrf.mxu0
        %2036 = vmatprep.mubr.f32.mxu0 0.0
        %2037 = vmatmul.mubr.f32.gmra.mxu0 %v853
        %v2038 = vpop.f32.mrf.mxu0
        %v2039 = vadd.f32 %v1654, %v2038
        %v2040 = vpop.f32.mrf.mxu0
        %2041 = vmatprep.mubr.f32.mxu0 0.0
        %2042 = vmatmul.mubr.f32.gmra.mxu0 %v858
        %v2043 = vpop.f32.mrf.mxu0
        %v2044 = vadd.f32 %v1659, %v2043
        %v2045 = vpop.f32.mrf.mxu0
        %2046 = vmatprep.mubr.f32.mxu0 0.0
        %2047 = vmatmul.mubr.f32.gmra.mxu0 %v863
        %v2048 = vpop.f32.mrf.mxu0
        %v2049 = vadd.f32 %v1664, %v2048
        %v2050 = vpop.f32.mrf.mxu0
        %2051 = vmatprep.mubr.f32.mxu0 0.0
        %2052 = vmatmul.mubr.f32.gmra.mxu0 %v868
        %v2053 = vpop.f32.mrf.mxu0
        %v2054 = vadd.f32 %v1669, %v2053
        %v2055 = vpop.f32.mrf.mxu0
        %2056 = vmatprep.mubr.f32.mxu0 0.0
        %2057 = vmatmul.mubr.f32.gmra.mxu0 %v873
        %v2058 = vpop.f32.mrf.mxu0
        %v2059 = vadd.f32 %v1674, %v2058
        %v2060 = vpop.f32.mrf.mxu0
        %2061 = vmatprep.mubr.f32.mxu0 0.0
        %2062 = vmatmul.mubr.f32.gmra.mxu0 %v878
        %v2063 = vpop.f32.mrf.mxu0
        %v2064 = vadd.f32 %v1679, %v2063
        %v2065 = vpop.f32.mrf.mxu0
        %2066 = vmatprep.mubr.f32.mxu0 0.0
        %2067 = vmatmul.mubr.f32.gmra.mxu0 %v883
        %v2068 = vpop.f32.mrf.mxu0
        %v2069 = vadd.f32 %v1684, %v2068
        %v2070 = vpop.f32.mrf.mxu0
        %2071 = vmatprep.mubr.f32.mxu0 0.0
        %2072 = vmatmul.mubr.f32.gmra.mxu0 %v888
        %v2073 = vpop.f32.mrf.mxu0
        %v2074 = vadd.f32 %v1689, %v2073
        %v2075 = vpop.f32.mrf.mxu0
        %2076 = vmatprep.mubr.f32.mxu0 0.0
        %2077 = vmatmul.mubr.f32.gmra.mxu0 %v893
        %v2078 = vpop.f32.mrf.mxu0
        %v2079 = vadd.f32 %v1694, %v2078
        %v2080 = vpop.f32.mrf.mxu0
        %2081 = vmatprep.mubr.f32.mxu0 0.0
        %2082 = vmatmul.mubr.f32.gmra.mxu0 %v898
        %v2083 = vpop.f32.mrf.mxu0
        %v2084 = vadd.f32 %v1699, %v2083
        %v2085 = vpop.f32.mrf.mxu0
        %2086 = vmatprep.mubr.f32.mxu0 0.0
        %2087 = vmatmul.mubr.f32.gmra.mxu0 %v903
        %v2088 = vpop.f32.mrf.mxu0
        %v2089 = vadd.f32 %v1704, %v2088
        %v2090 = vpop.f32.mrf.mxu0
        %2091 = vmatprep.mubr.f32.mxu0 0.0
        %2092 = vmatmul.mubr.f32.gmra.mxu0 %v908
        %v2093 = vpop.f32.mrf.mxu0
        %v2094 = vadd.f32 %v1709, %v2093
        %v2095 = vpop.f32.mrf.mxu0
        %2096 = vmatprep.mubr.f32.mxu0 0.0
        %2097 = vmatmul.mubr.f32.gmra.mxu0 %v913
        %v2098 = vpop.f32.mrf.mxu0
        %v2099 = vadd.f32 %v1714, %v2098
        %v2100 = vpop.f32.mrf.mxu0
        %2101 = vmatprep.mubr.f32.mxu0 0.0
        %2102 = vmatmul.mubr.f32.gmra.mxu0 %v918
        %v2103 = vpop.f32.mrf.mxu0
        %v2104 = vadd.f32 %v1719, %v2103
        %v2105 = vpop.f32.mrf.mxu0
        %2106 = vmatprep.mubr.f32.mxu0 0.0
        %2107 = vmatmul.mubr.f32.gmra.mxu0 %v923
        %v2108 = vpop.f32.mrf.mxu0
        %v2109 = vadd.f32 %v1724, %v2108
        %v2110 = vpop.f32.mrf.mxu0
        %2111 = vmatprep.mubr.f32.mxu0 0.0
        %2112 = vmatmul.mubr.f32.gmra.mxu0 %v928
        %v2113 = vpop.f32.mrf.mxu0
        %v2114 = vadd.f32 %v1729, %v2113
        %v2115 = vpop.f32.mrf.mxu0
        %2116 = vmatprep.mubr.f32.mxu0 0.0
        %2117 = vmatmul.mubr.f32.gmra.mxu0 %v933
        %v2118 = vpop.f32.mrf.mxu0
        %v2119 = vadd.f32 %v1734, %v2118
        %v2120 = vpop.f32.mrf.mxu0
        %2121 = vmatprep.mubr.f32.mxu0 0.0
        %2122 = vmatmul.mubr.f32.gmra.mxu0 %v938
        %v2123 = vpop.f32.mrf.mxu0
        %v2124 = vadd.f32 %v1739, %v2123
        %v2125 = vpop.f32.mrf.mxu0
        %2126 = vmatprep.mubr.f32.mxu0 0.0
        %2127 = vmatmul.mubr.f32.gmra.mxu0 %v943
        %v2128 = vpop.f32.mrf.mxu0
        %v2129 = vadd.f32 %v1744, %v2128
        %v2130 = vpop.f32.mrf.mxu0
        %2131 = vmatprep.mubr.f32.mxu0 0.0
        %2132 = vmatmul.mubr.f32.gmra.mxu0 %v948
        %v2133 = vpop.f32.mrf.mxu0
        %v2134 = vadd.f32 %v1749, %v2133
        %v2135 = vpop.f32.mrf.mxu0
        %2136 = vmatprep.mubr.f32.mxu0 0.0
        %2137 = vmatmul.mubr.f32.gmra.mxu0 %v953
        %v2138 = vpop.f32.mrf.mxu0
        %v2139 = vadd.f32 %v1754, %v2138
        %v2140 = vpop.f32.mrf.mxu0
        %2141 = vmatprep.mubr.f32.mxu0 0.0
        %2142 = vmatmul.mubr.f32.gmra.mxu0 %v958
        %v2143 = vpop.f32.mrf.mxu0
        %v2144 = vadd.f32 %v1759, %v2143
        %v2145 = vpop.f32.mrf.mxu0
        %2146 = vmatprep.mubr.f32.mxu0 0.0
        %2147 = vmatmul.mubr.f32.gmra.mxu0 %v963
        %v2148 = vpop.f32.mrf.mxu0
        %v2149 = vadd.f32 %v1764, %v2148
        %v2150 = vpop.f32.mrf.mxu0
        %2151 = vmatprep.mubr.f32.mxu0 0.0
        %2152 = vmatmul.mubr.f32.gmra.mxu0 %v968
        %v2153 = vpop.f32.mrf.mxu0
        %v2154 = vadd.f32 %v1769, %v2153
        %v2155 = vpop.f32.mrf.mxu0
        %2156 = vmatprep.mubr.f32.mxu0 0.0
        %2157 = vmatmul.mubr.f32.gmra.mxu0 %v973
        %v2158 = vpop.f32.mrf.mxu0
        %v2159 = vadd.f32 %v1774, %v2158
        %v2160 = vpop.f32.mrf.mxu0
        %2161 = vmatprep.mubr.f32.mxu0 0.0
        %2162 = vmatmul.mubr.f32.gmra.mxu0 %v978
        %v2163 = vpop.f32.mrf.mxu0
        %v2164 = vadd.f32 %v1779, %v2163
        %v2165 = vpop.f32.mrf.mxu0
        %2166 = vmatprep.mubr.f32.mxu0 0.0
        %2167 = vmatmul.mubr.f32.gmra.mxu0 %v983
        %v2168 = vpop.f32.mrf.mxu0
        %v2169 = vadd.f32 %v1784, %v2168
        %v2170 = vpop.f32.mrf.mxu0
        %2171 = vmatprep.mubr.f32.mxu0 0.0
        %2172 = vmatmul.mubr.f32.gmra.mxu0 %v988
        %v2173 = vpop.f32.mrf.mxu0
        %v2174 = vadd.f32 %v1789, %v2173
        %v2175 = vpop.f32.mrf.mxu0
        %2176 = vmatprep.mubr.f32.mxu0 0.0
        %2177 = vmatmul.mubr.f32.gmra.mxu0 %v993
        %v2178 = vpop.f32.mrf.mxu0
        %v2179 = vadd.f32 %v1794, %v2178
        %v2180 = vpop.f32.mrf.mxu0
        %2181 = vmatprep.mubr.f32.mxu0 0.0
        %2182 = vmatmul.mubr.f32.gmra.mxu0 %v998
        %v2183 = vpop.f32.mrf.mxu0
        %v2184 = vadd.f32 %v1799, %v2183
        %v2185 = vpop.f32.mrf.mxu0
        %2186 = vmatprep.mubr.f32.mxu0 0.0
        %2187 = vmatmul.mubr.f32.gmra.mxu0 %v1003
        %v2188 = vpop.f32.mrf.mxu0
        %v2189 = vadd.f32 %v1804, %v2188
        %v2190 = vpop.f32.mrf.mxu0
        %2191 = vmatprep.mubr.f32.mxu0 0.0
        %2192 = vmatmul.mubr.f32.gmra.mxu0 %v1008
        %v2193 = vpop.f32.mrf.mxu0
        %v2194 = vadd.f32 %v1809, %v2193
        %v2195 = vpop.f32.mrf.mxu0
        %2196 = vmatprep.mubr.f32.mxu0 0.0
        %2197 = vmatmul.mubr.f32.gmra.mxu0 %v1013
        %v2198 = vpop.f32.mrf.mxu0
        %v2199 = vadd.f32 %v1814, %v2198
        %v2200 = vpop.f32.mrf.mxu0
        %2201 = vmatprep.mubr.f32.mxu0 0.0
        %2202 = vmatmul.mubr.f32.gmra.mxu0 %v1018
        %v2203 = vpop.f32.mrf.mxu0
        %v2204 = vadd.f32 %v1819, %v2203
        %v2205 = vpop.f32.mrf.mxu0
        %2206 = vmatprep.mubr.f32.mxu0 0.0
        %2207 = vmatmul.mubr.f32.gmra.mxu0 %v1023
        %v2208 = vpop.f32.mrf.mxu0
        %v2209 = vadd.f32 %v1824, %v2208
        %v2210 = vpop.f32.mrf.mxu0
        %2211 = vmatprep.mubr.f32.mxu0 0.0
        %2212 = vmatmul.mubr.f32.gmra.mxu0 %v1028
        %v2213 = vpop.f32.mrf.mxu0
        %v2214 = vadd.f32 %v1829, %v2213
        %v2215 = vpop.f32.mrf.mxu0
        %2216 = vdwg.mxu0
        %vm2217 = vcmask 7168
        %2218 = vst.msk [vmem:[%s378] sm:$0xff] %vm2217, %v1899
        %2219 = vst.msk [vmem:[%s378 + $0x8] sm:$0xff] %vm2217, %v1904
        %2220 = vst.msk [vmem:[%s378 + $0x10] sm:$0xff] %vm2217, %v1909
        %2221 = vst.msk [vmem:[%s378 + $0x18] sm:$0xff] %vm2217, %v1914
        %2222 = vst.msk [vmem:[%s378 + $0x20] sm:$0xff] %vm2217, %v1919
        %2223 = vst.msk [vmem:[%s378 + $0x28] sm:$0xff] %vm2217, %v1924
        %2224 = vst.msk [vmem:[%s378 + $0x30] sm:$0xff] %vm2217, %v1929
        %2225 = vst.msk [vmem:[%s378 + $0x38] sm:$0xff] %vm2217, %v1934
        %2226 = vst.msk [vmem:[%s378 + $0x40] sm:$0xff] %vm2217, %v1939
        %2227 = vst.msk [vmem:[%s378 + $0x48] sm:$0xff] %vm2217, %v1944
        %2228 = vst.msk [vmem:[%s378 + $0x50] sm:$0xff] %vm2217, %v1949
        %2229 = vst.msk [vmem:[%s378 + $0x58] sm:$0xff] %vm2217, %v1954
        %2230 = vst.msk [vmem:[%s378 + $0x60] sm:$0xff] %vm2217, %v1959
        %2231 = vst.msk [vmem:[%s378 + $0x68] sm:$0xff] %vm2217, %v1964
        %2232 = vst.msk [vmem:[%s378 + $0x70] sm:$0xff] %vm2217, %v1969
        %2233 = vst.msk [vmem:[%s378 + $0x78] sm:$0xff] %vm2217, %v1974
        %2234 = vst.msk [vmem:[%s378 + $0x80] sm:$0xff] %vm2217, %v1979
        %2235 = vst.msk [vmem:[%s378 + $0x88] sm:$0xff] %vm2217, %v1984
        %2236 = vst.msk [vmem:[%s378 + $0x90] sm:$0xff] %vm2217, %v1989
        %2237 = vst.msk [vmem:[%s378 + $0x98] sm:$0xff] %vm2217, %v1994
        %2238 = vst.msk [vmem:[%s378 + $0xa0] sm:$0xff] %vm2217, %v1999
        %2239 = vst.msk [vmem:[%s378 + $0xa8] sm:$0xff] %vm2217, %v2004
        %2240 = vst.msk [vmem:[%s378 + $0xb0] sm:$0xff] %vm2217, %v2009
        %2241 = vst.msk [vmem:[%s378 + $0xb8] sm:$0xff] %vm2217, %v2014
        %2242 = vst.msk [vmem:[%s378 + $0xc0] sm:$0xff] %vm2217, %v2019
        %2243 = vst.msk [vmem:[%s378 + $0xc8] sm:$0xff] %vm2217, %v2024
        %2244 = vst.msk [vmem:[%s378 + $0xd0] sm:$0xff] %vm2217, %v2029
        %2245 = vst.msk [vmem:[%s378 + $0xd8] sm:$0xff] %vm2217, %v2034
        %2246 = vst.msk [vmem:[%s378 + $0xe0] sm:$0xff] %vm2217, %v2039
        %2247 = vst.msk [vmem:[%s378 + $0xe8] sm:$0xff] %vm2217, %v2044
        %2248 = vst.msk [vmem:[%s378 + $0xf0] sm:$0xff] %vm2217, %v2049
        %2249 = vst.msk [vmem:[%s378 + $0xf8] sm:$0xff] %vm2217, %v2054
        %2250 = vst.msk [vmem:[%s378 + $0x100] sm:$0xff] %vm2217, %v2059
        %2251 = vst.msk [vmem:[%s378 + $0x108] sm:$0xff] %vm2217, %v2064
        %2252 = vst.msk [vmem:[%s378 + $0x110] sm:$0xff] %vm2217, %v2069
        %2253 = vst.msk [vmem:[%s378 + $0x118] sm:$0xff] %vm2217, %v2074
        %2254 = vst.msk [vmem:[%s378 + $0x120] sm:$0xff] %vm2217, %v2079
        %2255 = vst.msk [vmem:[%s378 + $0x128] sm:$0xff] %vm2217, %v2084
        %2256 = vst.msk [vmem:[%s378 + $0x130] sm:$0xff] %vm2217, %v2089
        %2257 = vst.msk [vmem:[%s378 + $0x138] sm:$0xff] %vm2217, %v2094
        %2258 = vst.msk [vmem:[%s378 + $0x140] sm:$0xff] %vm2217, %v2099
        %2259 = vst.msk [vmem:[%s378 + $0x148] sm:$0xff] %vm2217, %v2104
        %2260 = vst.msk [vmem:[%s378 + $0x150] sm:$0xff] %vm2217, %v2109
        %2261 = vst.msk [vmem:[%s378 + $0x158] sm:$0xff] %vm2217, %v2114
        %2262 = vst.msk [vmem:[%s378 + $0x160] sm:$0xff] %vm2217, %v2119
        %2263 = vst.msk [vmem:[%s378 + $0x168] sm:$0xff] %vm2217, %v2124
        %2264 = vst.msk [vmem:[%s378 + $0x170] sm:$0xff] %vm2217, %v2129
        %2265 = vst.msk [vmem:[%s378 + $0x178] sm:$0xff] %vm2217, %v2134
        %2266 = vst.msk [vmem:[%s378 + $0x180] sm:$0xff] %vm2217, %v2139
        %2267 = vst.msk [vmem:[%s378 + $0x188] sm:$0xff] %vm2217, %v2144
        %2268 = vst.msk [vmem:[%s378 + $0x190] sm:$0xff] %vm2217, %v2149
        %2269 = vst.msk [vmem:[%s378 + $0x198] sm:$0xff] %vm2217, %v2154
        %2270 = vst.msk [vmem:[%s378 + $0x1a0] sm:$0xff] %vm2217, %v2159
        %2271 = vst.msk [vmem:[%s378 + $0x1a8] sm:$0xff] %vm2217, %v2164
        %2272 = vst.msk [vmem:[%s378 + $0x1b0] sm:$0xff] %vm2217, %v2169
        %2273 = vst.msk [vmem:[%s378 + $0x1b8] sm:$0xff] %vm2217, %v2174
        %2274 = vst.msk [vmem:[%s378 + $0x1c0] sm:$0xff] %vm2217, %v2179
        %2275 = vst.msk [vmem:[%s378 + $0x1c8] sm:$0xff] %vm2217, %v2184
        %2276 = vst.msk [vmem:[%s378 + $0x1d0] sm:$0xff] %vm2217, %v2189
        %2277 = vst.msk [vmem:[%s378 + $0x1d8] sm:$0xff] %vm2217, %v2194
        %2278 = vst.msk [vmem:[%s378 + $0x1e0] sm:$0xff] %vm2217, %v2199
        %2279 = vst.msk [vmem:[%s378 + $0x1e8] sm:$0xff] %vm2217, %v2204
        %2280 = vst.msk [vmem:[%s378 + $0x1f0] sm:$0xff] %vm2217, %v2209
        %2281 = vst.msk [vmem:[%s378 + $0x1f8] sm:$0xff] %vm2217, %v2214
        %v2282 = vld [vmem:[%s5] sm:$0x1]
        %v2283 = vld [vmem:[%s6] sm:$0x1]
        %2284 = vmatprep.subr.mxu0 0.0
        %2285 = vmatpush1.xpose.msra.mxu0 %v1366
        %2286 = vmatprep.subr.mxu0 0.0
        %2287 = vmatpush1.xpose.msra.mxu0 %v1365
        %2288 = vmatprep.subr.mxu0 0.0
        %2289 = vmatpush1.xpose.msra.mxu0 %v1364
        %2290 = vmatprep.subr.mxu0 0.0
        %2291 = vmatpush1.xpose.msra.mxu0 %v1363
        %2292 = vmatprep.subr.mxu0 0.0
        %2293 = vmatpush1.xpose.msra.mxu0 %v1362
        %2294 = vmatprep.subr.mxu0 0.0
        %2295 = vmatpush1.xpose.msra.mxu0 %v1361
        %2296 = vmatprep.subr.mxu0 0.0
        %2297 = vmatpush1.xpose.msra.mxu0 %v1360
        %2298 = vmatprep.subr.mxu0 0.0
        %2299 = vmatpush1.xpose.msra.mxu0 %v1359
        %2300 = vmatprep.subr.mxu0 0.0
        %2301 = vmatpush1.xpose.msra.mxu0 %v1358
        %2302 = vmatprep.subr.mxu0 0.0
        %2303 = vmatpush1.xpose.msra.mxu0 %v1357
        %2304 = vmatprep.subr.mxu0 0.0
        %2305 = vmatpush1.xpose.msra.mxu0 %v1356
        %2306 = vmatprep.subr.mxu0 0.0
        %2307 = vmatpush1.xpose.msra.mxu0 %v1355
        %2308 = vmatprep.subr.mxu0 0.0
        %2309 = vmatpush1.xpose.msra.mxu0 %v1354
        %2310 = vmatprep.subr.mxu0 0.0
        %2311 = vmatpush1.xpose.msra.mxu0 %v1353
        %2312 = vmatprep.subr.mxu0 0.0
        %2313 = vmatpush1.xpose.msra.mxu0 %v1352
        %2314 = vmatprep.subr.mxu0 0.0
        %2315 = vmatpush1.xpose.msra.mxu0 %v1351
        %2316 = vmatprep.subr.mxu0 0.0
        %2317 = vmatpush2.xpose.msra.mxu0 %v1382
        %2318 = vmatprep.subr.mxu0 0.0
        %2319 = vmatpush2.xpose.msra.mxu0 %v1381
        %2320 = vmatprep.subr.mxu0 0.0
        %2321 = vmatpush2.xpose.msra.mxu0 %v1380
        %2322 = vmatprep.subr.mxu0 0.0
        %2323 = vmatpush2.xpose.msra.mxu0 %v1379
        %2324 = vmatprep.subr.mxu0 0.0
        %2325 = vmatpush2.xpose.msra.mxu0 %v1378
        %2326 = vmatprep.subr.mxu0 0.0
        %2327 = vmatpush2.xpose.msra.mxu0 %v1377
        %2328 = vmatprep.subr.mxu0 0.0
        %2329 = vmatpush2.xpose.msra.mxu0 %v1376
        %2330 = vmatprep.subr.mxu0 0.0
        %2331 = vmatpush2.xpose.msra.mxu0 %v1375
        %2332 = vmatprep.subr.mxu0 0.0
        %2333 = vmatpush2.xpose.msra.mxu0 %v1374
        %2334 = vmatprep.subr.mxu0 0.0
        %2335 = vmatpush2.xpose.msra.mxu0 %v1373
        %2336 = vmatprep.subr.mxu0 0.0
        %2337 = vmatpush2.xpose.msra.mxu0 %v1372
        %2338 = vmatprep.subr.mxu0 0.0
        %2339 = vmatpush2.xpose.msra.mxu0 %v1371
        %2340 = vmatprep.subr.mxu0 0.0
        %2341 = vmatpush2.xpose.msra.mxu0 %v1370
        %2342 = vmatprep.subr.mxu0 0.0
        %2343 = vmatpush2.xpose.msra.mxu0 %v1369
        %2344 = vmatprep.subr.mxu0 0.0
        %2345 = vmatpush2.xpose.msra.mxu0 %v1368
        %2346 = vmatprep.subr.mxu0 0.0
        %2347 = vmatpush2.xpose.msra.mxu0 %v1367
        %2348 = vmatprep.mubr.f32.mxu0 0.0
        %2349 = vmatmul.mubr.f32.gmra.mxu0 %v2283
        %v2350 = vpop.f32.mrf.mxu0
        %v2351 = vadd.f32 0.0, %v2350
        %v2352 = vpop.f32.mrf.mxu0
        %v2353 = vadd.f32 0.0, %v2352
        %2354 = vdwg.mxu0
        %2355 = vmatprep.subr.mxu0 0.0
        %2356 = vmatpush1.xpose.msra.mxu0 %v1398
        %2357 = vmatprep.subr.mxu0 0.0
        %2358 = vmatpush1.xpose.msra.mxu0 %v1397
        %2359 = vmatprep.subr.mxu0 0.0
        %2360 = vmatpush1.xpose.msra.mxu0 %v1396
        %2361 = vmatprep.subr.mxu0 0.0
        %2362 = vmatpush1.xpose.msra.mxu0 %v1395
        %2363 = vmatprep.subr.mxu0 0.0
        %2364 = vmatpush1.xpose.msra.mxu0 %v1394
        %2365 = vmatprep.subr.mxu0 0.0
        %2366 = vmatpush1.xpose.msra.mxu0 %v1393
        %2367 = vmatprep.subr.mxu0 0.0
        %2368 = vmatpush1.xpose.msra.mxu0 %v1392
        %2369 = vmatprep.subr.mxu0 0.0
        %2370 = vmatpush1.xpose.msra.mxu0 %v1391
        %2371 = vmatprep.subr.mxu0 0.0
        %2372 = vmatpush1.xpose.msra.mxu0 %v1390
        %2373 = vmatprep.subr.mxu0 0.0
        %2374 = vmatpush1.xpose.msra.mxu0 %v1389
        %2375 = vmatprep.subr.mxu0 0.0
        %2376 = vmatpush1.xpose.msra.mxu0 %v1388
        %2377 = vmatprep.subr.mxu0 0.0
        %2378 = vmatpush1.xpose.msra.mxu0 %v1387
        %2379 = vmatprep.subr.mxu0 0.0
        %2380 = vmatpush1.xpose.msra.mxu0 %v1386
        %2381 = vmatprep.subr.mxu0 0.0
        %2382 = vmatpush1.xpose.msra.mxu0 %v1385
        %2383 = vmatprep.subr.mxu0 0.0
        %2384 = vmatpush1.xpose.msra.mxu0 %v1384
        %2385 = vmatprep.subr.mxu0 0.0
        %2386 = vmatpush1.xpose.msra.mxu0 %v1383
        %2387 = vmatprep.subr.mxu0 0.0
        %2388 = vmatpush2.xpose.msra.mxu0 %v1414
        %2389 = vmatprep.subr.mxu0 0.0
        %2390 = vmatpush2.xpose.msra.mxu0 %v1413
        %2391 = vmatprep.subr.mxu0 0.0
        %2392 = vmatpush2.xpose.msra.mxu0 %v1412
        %2393 = vmatprep.subr.mxu0 0.0
        %2394 = vmatpush2.xpose.msra.mxu0 %v1411
        %2395 = vmatprep.subr.mxu0 0.0
        %2396 = vmatpush2.xpose.msra.mxu0 %v1410
        %2397 = vmatprep.subr.mxu0 0.0
        %2398 = vmatpush2.xpose.msra.mxu0 %v1409
        %2399 = vmatprep.subr.mxu0 0.0
        %2400 = vmatpush2.xpose.msra.mxu0 %v1408
        %2401 = vmatprep.subr.mxu0 0.0
        %2402 = vmatpush2.xpose.msra.mxu0 %v1407
        %2403 = vmatprep.subr.mxu0 0.0
        %2404 = vmatpush2.xpose.msra.mxu0 %v1406
        %2405 = vmatprep.subr.mxu0 0.0
        %2406 = vmatpush2.xpose.msra.mxu0 %v1405
        %2407 = vmatprep.subr.mxu0 0.0
        %2408 = vmatpush2.xpose.msra.mxu0 %v1404
        %2409 = vmatprep.subr.mxu0 0.0
        %2410 = vmatpush2.xpose.msra.mxu0 %v1403
        %2411 = vmatprep.subr.mxu0 0.0
        %2412 = vmatpush2.xpose.msra.mxu0 %v1402
        %2413 = vmatprep.subr.mxu0 0.0
        %2414 = vmatpush2.xpose.msra.mxu0 %v1401
        %2415 = vmatprep.subr.mxu0 0.0
        %2416 = vmatpush2.xpose.msra.mxu0 %v1400
        %2417 = vmatprep.subr.mxu0 0.0
        %2418 = vmatpush2.xpose.msra.mxu0 %v1399
        %2419 = vmatprep.mubr.f32.mxu0 0.0
        %2420 = vmatmul.mubr.f32.gmra.mxu0 %v2283
        %v2421 = vpop.f32.mrf.mxu0
        %v2422 = vadd.f32 0.0, %v2421
        %v2423 = vpop.f32.mrf.mxu0
        %v2424 = vadd.f32 0.0, %v2423
        %2425 = vdwg.mxu0
        %2426 = vmatprep.subr.mxu0 0.0
        %2427 = vmatpush1.xpose.msra.mxu0 %v788
        %2428 = vmatprep.subr.mxu0 0.0
        %2429 = vmatpush1.xpose.msra.mxu0 %v783
        %2430 = vmatprep.subr.mxu0 0.0
        %2431 = vmatpush1.xpose.msra.mxu0 %v778
        %2432 = vmatprep.subr.mxu0 0.0
        %2433 = vmatpush1.xpose.msra.mxu0 %v773
        %2434 = vmatprep.subr.mxu0 0.0
        %2435 = vmatpush1.xpose.msra.mxu0 %v768
        %2436 = vmatprep.subr.mxu0 0.0
        %2437 = vmatpush1.xpose.msra.mxu0 %v763
        %2438 = vmatprep.subr.mxu0 0.0
        %2439 = vmatpush1.xpose.msra.mxu0 %v758
        %2440 = vmatprep.subr.mxu0 0.0
        %2441 = vmatpush1.xpose.msra.mxu0 %v753
        %2442 = vmatprep.subr.mxu0 0.0
        %2443 = vmatpush1.xpose.msra.mxu0 %v748
        %2444 = vmatprep.subr.mxu0 0.0
        %2445 = vmatpush1.xpose.msra.mxu0 %v743
        %2446 = vmatprep.subr.mxu0 0.0
        %2447 = vmatpush1.xpose.msra.mxu0 %v738
        %2448 = vmatprep.subr.mxu0 0.0
        %2449 = vmatpush1.xpose.msra.mxu0 %v733
        %2450 = vmatprep.subr.mxu0 0.0
        %2451 = vmatpush1.xpose.msra.mxu0 %v728
        %2452 = vmatprep.subr.mxu0 0.0
        %2453 = vmatpush1.xpose.msra.mxu0 %v723
        %2454 = vmatprep.subr.mxu0 0.0
        %2455 = vmatpush1.xpose.msra.mxu0 %v718
        %2456 = vmatprep.subr.mxu0 0.0
        %2457 = vmatpush1.xpose.msra.mxu0 %v713
        %2458 = vmatprep.subr.mxu0 0.0
        %2459 = vmatpush2.xpose.msra.mxu0 %v868
        %2460 = vmatprep.subr.mxu0 0.0
        %2461 = vmatpush2.xpose.msra.mxu0 %v863
        %2462 = vmatprep.subr.mxu0 0.0
        %2463 = vmatpush2.xpose.msra.mxu0 %v858
        %2464 = vmatprep.subr.mxu0 0.0
        %2465 = vmatpush2.xpose.msra.mxu0 %v853
        %2466 = vmatprep.subr.mxu0 0.0
        %2467 = vmatpush2.xpose.msra.mxu0 %v848
        %2468 = vmatprep.subr.mxu0 0.0
        %2469 = vmatpush2.xpose.msra.mxu0 %v843
        %2470 = vmatprep.subr.mxu0 0.0
        %2471 = vmatpush2.xpose.msra.mxu0 %v838
        %2472 = vmatprep.subr.mxu0 0.0
        %2473 = vmatpush2.xpose.msra.mxu0 %v833
        %2474 = vmatprep.subr.mxu0 0.0
        %2475 = vmatpush2.xpose.msra.mxu0 %v828
        %2476 = vmatprep.subr.mxu0 0.0
        %2477 = vmatpush2.xpose.msra.mxu0 %v823
        %2478 = vmatprep.subr.mxu0 0.0
        %2479 = vmatpush2.xpose.msra.mxu0 %v818
        %2480 = vmatprep.subr.mxu0 0.0
        %2481 = vmatpush2.xpose.msra.mxu0 %v813
        %2482 = vmatprep.subr.mxu0 0.0
        %2483 = vmatpush2.xpose.msra.mxu0 %v808
        %2484 = vmatprep.subr.mxu0 0.0
        %2485 = vmatpush2.xpose.msra.mxu0 %v803
        %2486 = vmatprep.subr.mxu0 0.0
        %2487 = vmatpush2.xpose.msra.mxu0 %v798
        %2488 = vmatprep.subr.mxu0 0.0
        %2489 = vmatpush2.xpose.msra.mxu0 %v793
        %2490 = vmatprep.mubr.f32.mxu0 0.0
        %2491 = vmatmul.mubr.f32.gmra.mxu0 %v2282
        %v2492 = vpop.f32.mrf.mxu0
        %v2493 = vadd.f32 %v2351, %v2492
        %v2494 = vpop.f32.mrf.mxu0
        %v2495 = vadd.f32 %v2353, %v2494
        %2496 = vdwg.mxu0
        %2497 = vmatprep.subr.mxu0 0.0
        %2498 = vmatpush1.xpose.msra.mxu0 %v948
        %2499 = vmatprep.subr.mxu0 0.0
        %2500 = vmatpush1.xpose.msra.mxu0 %v943
        %2501 = vmatprep.subr.mxu0 0.0
        %2502 = vmatpush1.xpose.msra.mxu0 %v938
        %2503 = vmatprep.subr.mxu0 0.0
        %2504 = vmatpush1.xpose.msra.mxu0 %v933
        %2505 = vmatprep.subr.mxu0 0.0
        %2506 = vmatpush1.xpose.msra.mxu0 %v928
        %2507 = vmatprep.subr.mxu0 0.0
        %2508 = vmatpush1.xpose.msra.mxu0 %v923
        %2509 = vmatprep.subr.mxu0 0.0
        %2510 = vmatpush1.xpose.msra.mxu0 %v918
        %2511 = vmatprep.subr.mxu0 0.0
        %2512 = vmatpush1.xpose.msra.mxu0 %v913
        %2513 = vmatprep.subr.mxu0 0.0
        %2514 = vmatpush1.xpose.msra.mxu0 %v908
        %2515 = vmatprep.subr.mxu0 0.0
        %2516 = vmatpush1.xpose.msra.mxu0 %v903
        %2517 = vmatprep.subr.mxu0 0.0
        %2518 = vmatpush1.xpose.msra.mxu0 %v898
        %2519 = vmatprep.subr.mxu0 0.0
        %2520 = vmatpush1.xpose.msra.mxu0 %v893
        %2521 = vmatprep.subr.mxu0 0.0
        %2522 = vmatpush1.xpose.msra.mxu0 %v888
        %2523 = vmatprep.subr.mxu0 0.0
        %2524 = vmatpush1.xpose.msra.mxu0 %v883
        %2525 = vmatprep.subr.mxu0 0.0
        %2526 = vmatpush1.xpose.msra.mxu0 %v878
        %2527 = vmatprep.subr.mxu0 0.0
        %2528 = vmatpush1.xpose.msra.mxu0 %v873
        %2529 = vmatprep.subr.mxu0 0.0
        %2530 = vmatpush2.xpose.msra.mxu0 %v1028
        %2531 = vmatprep.subr.mxu0 0.0
        %2532 = vmatpush2.xpose.msra.mxu0 %v1023
        %2533 = vmatprep.subr.mxu0 0.0
        %2534 = vmatpush2.xpose.msra.mxu0 %v1018
        %2535 = vmatprep.subr.mxu0 0.0
        %2536 = vmatpush2.xpose.msra.mxu0 %v1013
        %2537 = vmatprep.subr.mxu0 0.0
        %2538 = vmatpush2.xpose.msra.mxu0 %v1008
        %2539 = vmatprep.subr.mxu0 0.0
        %2540 = vmatpush2.xpose.msra.mxu0 %v1003
        %2541 = vmatprep.subr.mxu0 0.0
        %2542 = vmatpush2.xpose.msra.mxu0 %v998
        %2543 = vmatprep.subr.mxu0 0.0
        %2544 = vmatpush2.xpose.msra.mxu0 %v993
        %2545 = vmatprep.subr.mxu0 0.0
        %2546 = vmatpush2.xpose.msra.mxu0 %v988
        %2547 = vmatprep.subr.mxu0 0.0
        %2548 = vmatpush2.xpose.msra.mxu0 %v983
        %2549 = vmatprep.subr.mxu0 0.0
        %2550 = vmatpush2.xpose.msra.mxu0 %v978
        %2551 = vmatprep.subr.mxu0 0.0
        %2552 = vmatpush2.xpose.msra.mxu0 %v973
        %2553 = vmatprep.subr.mxu0 0.0
        %2554 = vmatpush2.xpose.msra.mxu0 %v968
        %2555 = vmatprep.subr.mxu0 0.0
        %2556 = vmatpush2.xpose.msra.mxu0 %v963
        %2557 = vmatprep.subr.mxu0 0.0
        %2558 = vmatpush2.xpose.msra.mxu0 %v958
        %2559 = vmatprep.subr.mxu0 0.0
        %2560 = vmatpush2.xpose.msra.mxu0 %v953
        %2561 = vmatprep.mubr.f32.mxu0 0.0
        %2562 = vmatmul.mubr.f32.gmra.mxu0 %v2282
        %v2563 = vpop.f32.mrf.mxu0
        %v2564 = vadd.f32 %v2422, %v2563
        %v2565 = vpop.f32.mrf.mxu0
        %v2566 = vadd.f32 %v2424, %v2565
        %2567 = vdwg.mxu0
        %v2572 = vcombine.low %v2493, %v2495
        %v2573 = vcombine.low %v2564, %v2566
        %v2575 = vunpack.c.l.s4 1966171168
        %v2576 = vunpack.c.0.s8 %v2575
        %v2577 = vlaneseq
        %v2578 = vshrl.u32 %v2577, 7
        %v2579 = vsub.s32 %v2576, %v2578
        %v2580 = vrot.slane %v2572, %v2579
        %v2582 = vunpack.c.l.s4 1966171168
        %v2583 = vunpack.c.0.s8 %v2582
        %v2584 = vlaneseq
        %v2585 = vshrl.u32 %v2584, 7
        %v2586 = vsub.s32 %v2583, %v2585
        %v2587 = vrot.slane %v2573, %v2586
        %v2588 = vcombine.low %v2580, %v2587
        %v2590 = vunpack.c.l.s4 1966171168
        %v2591 = vunpack.c.0.s8 %v2590
        %v2592 = vlaneseq
        %v2593 = vshrl.u32 %v2592, 7
        %v2594 = vsub.s32 %v2591, %v2593
        %v2595 = vrot.slane %v2588, %v2594
        %v2597 = vlaneseq
        %vm2598 = vcmp.ge.s32.totalorder %v2597, 0
        %vm2599 = vcmp.lt.s32.totalorder %v2597, 512
        %vm2600 = vmand %vm2598, %vm2599
        %2601 = vst.msk [vmem:[%s360] sm:$0xf] %vm2600, %v2595
        %s2602 = sand.u32 %s192, 1
        %s2603 = scalar_lea.sflag [#allocation3], %s2602
        %s2604 = sand.u32 %s192, 1
        %s2605 = smul.addr %s2604, 256
        %s2606 = scalar_lea.vmem [#allocation2], %s2605
        %s2607 = smul.u32 64, %s27
        %p2608 = scmp.lt.s32.totalorder %s2607, 127
        %s2609 = scalar_select %p2608, %s2607, 127
        %s2610 = smul.addr %s2609, 8
        %s2611 = scalar_lea.vmem %s8, %s2610
        %s2612 = sand.u32 %s244, 1
        %s2613 = scalar_lea.sflag [#allocation5], %s2612
        %s2614 = sand.u32 %s244, 1
        %s2615 = smul.addr %s2614, 4
        %s2616 = scalar_lea.vmem [#allocation4], %s2615
        // Predicated region
        $region49: #{tpu_custom_call.1} parent=47 // pred_check
          %p2617 = pneg %p202
        $region50: #{tpu_custom_call.1} parent=47 // pred_check_branch
          %2619 = sbr.rel (%p2617) target = $region52
        $region51: #{tpu_custom_call.1} parent=47 // pred_region
          %s2620 = smul.u32 64, %s27
          %s2622 = ssub.s32 4096, 4096
          %2623 = vsyncadd %s2603, %s2622
          %s2624 = smul.addr %s2620, 64
          %s2625 = scalar_lea.hbm %s7, %s2624
          %s2626 = sshll.u32 %s2606, 4
          %s2627 = int_to_ptr.vmem [resolvable:$true] %s2626
          %2632 = dma.vmem_to_hbm [thread:$0]  %s2627, 4096, %s2625, %s2603, 64, 64, 4
        $region52: #{tpu_custom_call.1} parent=47 // pred_fallthru
          _
        // Predicated region
        $region53: #{tpu_custom_call.1} parent=47 // pred_check
          %p2633 = pneg %p228
        $region54: #{tpu_custom_call.1} parent=47 // pred_check_branch
          %2635 = sbr.rel (%p2633) target = $region56
        $region55: #{tpu_custom_call.1} parent=47 // pred_region
          %s2636 = smul.u32 64, %s27
        $region56: #{tpu_custom_call.1} parent=47 // pred_fallthru
          _
        // Predicated region
        $region57: #{tpu_custom_call.1} parent=47 // pred_check
          %p2637 = pneg %p254
        $region58: #{tpu_custom_call.1} parent=47 // pred_check_branch
          %2639 = sbr.rel (%p2637) target = $region60
        $region59: #{tpu_custom_call.1} parent=47 // pred_region
          %s2640 = smul.u32 4, %s27
          %s2642 = ssub.s32 64, 64
          %2643 = vsyncadd %s2613, %s2642
          %s2644 = smul.addr %s2640, 16
          %s2645 = scalar_lea.hbm %s9, %s2644
          %s2647 = sshll.u32 %s2616, 4
          %s2648 = int_to_ptr.vmem [resolvable:$true] %s2647
          %2650 = dma.vmem_to_hbm [thread:$0]  %s2648, 64, %s2645, %s2613
        $region60: #{tpu_custom_call.1} parent=47 // pred_fallthru
          _
      $region48: #{tpu_custom_call.1} parent=5 // pred_fallthru
        _
      %p2651 = scmp.le.s32.totalorder 2, %s22
      // Predicated region
      $region61: #{tpu_custom_call.1} parent=5 // pred_check
        %p2652 = pneg %p2651
      $region62: #{tpu_custom_call.1} parent=5 // pred_check_branch
        %2654 = sbr.rel (%p2652) target = $region64
      $region63: #{tpu_custom_call.1} parent=5 // pred_region
        %s2655 = ssub.s32 %s22, 2
        // Predicated region
        $region65: #{tpu_custom_call.1} parent=63 // pred_check
          %p2656 = pneg %p208
        $region66: #{tpu_custom_call.1} parent=63 // pred_check_branch
          %2658 = sbr.rel (%p2656) target = $region68
        $region67: #{tpu_custom_call.1} parent=63 // pred_region
          %s2659 = sand.u32 %s193, 1
          %s2660 = scalar_lea.sflag [#allocation3], %s2659
          %s2661 = sand.u32 %s193, 1
          %s2662 = smul.addr %s2661, 256
          %s2663 = scalar_lea.vmem [#allocation2], %s2662
          %2664 = dma.done %s2660, 4096
        $region68: #{tpu_custom_call.1} parent=63 // pred_fallthru
          _
        // Predicated region
        $region69: #{tpu_custom_call.1} parent=63 // pred_check
          %p2665 = pneg %p234
        $region70: #{tpu_custom_call.1} parent=63 // pred_check_branch
          %2667 = sbr.rel (%p2665) target = $region72
        $region71: #{tpu_custom_call.1} parent=63 // pred_region
          %s2668 = smul.u32 64, %s28
          %p2669 = scmp.lt.s32.totalorder %s2668, 127
          %s2670 = scalar_select %p2669, %s2668, 127
          %s2671 = smul.addr %s2670, 8
          %s2672 = scalar_lea.vmem %s8, %s2671
        $region72: #{tpu_custom_call.1} parent=63 // pred_fallthru
          _
        // Predicated region
        $region73: #{tpu_custom_call.1} parent=63 // pred_check
          %p2673 = pneg %p260
        $region74: #{tpu_custom_call.1} parent=63 // pred_check_branch
          %2675 = sbr.rel (%p2673) target = $region76
        $region75: #{tpu_custom_call.1} parent=63 // pred_region
          %s2676 = sand.u32 %s245, 1
          %s2677 = scalar_lea.sflag [#allocation5], %s2676
          %s2678 = sand.u32 %s245, 1
          %s2679 = smul.addr %s2678, 4
          %s2680 = scalar_lea.vmem [#allocation4], %s2679
          %2681 = dma.done %s2677, 64
        $region76: #{tpu_custom_call.1} parent=63 // pred_fallthru
          _
      $region64: #{tpu_custom_call.1} parent=5 // pred_fallthru
        _
    $region6: #{tpu_custom_call.1} parent=1 // loop_footer
      %s26 = sadd.s32 1, %s22
    $region7: #{tpu_custom_call.1} parent=1 // loop_footer_branch
      %21 = sbr.rel target = $region3
    $region8: #{tpu_custom_call.1} parent=1 // loop_exit
      _
    %2682 = vsyncpa [#allocation3], 1
    %s2683 = scalar_lea.sflag [#allocation3], 1
    %2684 = vsyncpa %s2683, 1
    %2685 = vsyncpa [#allocation5], 1
    %s2686 = scalar_lea.sflag [#allocation5], 1
    %2687 = vsyncpa %s2686, 1

</llo_original>
